<compile_context>
chip_gen: v7x
topology: tpu7x:2x2x1
jax: 0.10.0
libtpu: 0.0.40
codegen_flags: <defaults>
</compile_context>

<pallas_src>
import jax
import jax.numpy as jnp
from jax.experimental import pallas as pl
from jax.experimental.pallas import tpu as pltpu


def fused_lstm_mlp_kernel(x_ref, wih_ref, whh_ref, wmlp_ref, bias_ref, out_ref):
    # x_ref:    (T, Bb, F)   time-major batch block, matmul-operand dtype
    # wih_ref:  (F, 4H)      whh_ref: (H, 4H)
    # wmlp_ref: ((T + L)*H, H)  rows = [fc1 per-timestep | deep layers | final (O zero-padded to H cols)]
    # bias_ref: (1, (4 + L)*H + O) f32 = [b_lstm(4H) | b1(H) | bd((L-1)H) | b_f(O)]
    # out_ref:  (Bb, O) f32
    T, Bb, F = x_ref.shape
    H = whh_ref.shape[0]
    O = out_ref.shape[1]
    L = wmlp_ref.shape[0] // H - T          # n_deep_layers
    cdt = wih_ref.dtype                     # matmul-operand dtype (bf16 by default)

    # ---- hoisted, time-invariant input projection (bias folded in once) ----
    w_hh = whh_ref[...]                     # only weight reused across the loop
    xp = (jnp.dot(x_ref[...].reshape(T * Bb, F), wih_ref[...],
                  preferred_element_type=jnp.float32)
          + bias_ref[:, :4 * H])            # (T*Bb, 4H) f32, time-major rows

    # ---- fully-unrolled LSTM recurrence (PyTorch gate order i, f, g, o) ----
    # fc1 is folded in: acc accumulates h_t @ w1[t*H:(t+1)*H, :]; that matmul
    # does not feed h/c, so it stays off the recurrent critical path.
    h = jnp.zeros((Bb, H), jnp.float32)
    c = jnp.zeros((Bb, H), jnp.float32)
    acc = jnp.zeros((Bb, H), jnp.float32)
    for t in range(T):                      # static unroll
        gates = xp[t * Bb:(t + 1) * Bb, :] + jnp.dot(
            h.astype(cdt), w_hh, preferred_element_type=jnp.float32)
        i_g = jax.nn.sigmoid(gates[:, 0 * H:1 * H])
        f_g = jax.nn.sigmoid(gates[:, 1 * H:2 * H])
        g_g = jnp.tanh(gates[:, 2 * H:3 * H])
        o_g = jax.nn.sigmoid(gates[:, 3 * H:4 * H])
        c = f_g * c + i_g * g_g
        h = o_g * jnp.tanh(c)
        acc = acc + jnp.dot(h.astype(cdt), wmlp_ref[t * H:(t + 1) * H, :],
                            preferred_element_type=jnp.float32)

    # ---- fused MLP head ----
    # TODO(synk): Dropout layers are stochastic in train mode; treated as
    # eval-mode identity here (inference forward pass).
    act = acc + bias_ref[:, 4 * H:5 * H]                     # fc1 bias
    for li in range(L - 1):                                  # static unroll
        act = (jnp.dot(jax.nn.relu(act).astype(cdt),
                       wmlp_ref[(T + li) * H:(T + li + 1) * H, :],
                       preferred_element_type=jnp.float32)
               + bias_ref[:, (5 + li) * H:(6 + li) * H])
    final = jnp.dot(jax.nn.relu(act).astype(cdt),
                    wmlp_ref[(T + L - 1) * H:(T + L) * H, :],   # zero-padded O->H
                    preferred_element_type=jnp.float32)
    out_ref[...] = final[:, :O] + bias_ref[:, (4 + L) * H:]


def lstm_forecaster_forward(x, params):
    B, T, F = x.shape
    w_ih, w_hh = params["w_ih"], params["w_hh"]
    w_mlp, bias = params["w_mlp"], params["bias"]
    H = w_hh.shape[0]
    L = w_mlp.shape[0] // H - T
    O = bias.shape[1] - (4 + L) * H

    # Time-major layout + operand-dtype cast done once in the wrapper (fused by
    # XLA; halves x HBM->VMEM DMA bytes for bf16 and keeps the convert out of
    # the kernel prologue).
    x_tm = jnp.swapaxes(x, 0, 1).astype(w_ih.dtype)          # (T, B, F)

    # Batch-parallel grid: split the batch across v7x's two TensorCores once it
    # is big enough (per-core block stays a multiple of 8 rows).  grid=(1,) at
    # small B / on single-TC v5e/v6e.
    bb = B // 2 if (B >= 16 and B % 16 == 0) else B
    grid = (B // bb,)

    return pl.pallas_call(
        fused_lstm_mlp_kernel,
        out_shape=jax.ShapeDtypeStruct((B, O), jnp.float32),
        grid=grid,
        in_specs=[
            pl.BlockSpec((T, bb, F), lambda i: (0, i, 0)),
            pl.BlockSpec(w_ih.shape, lambda i: (0, 0)),
            pl.BlockSpec(w_hh.shape, lambda i: (0, 0)),
            pl.BlockSpec(w_mlp.shape, lambda i: (0, 0)),
            pl.BlockSpec(bias.shape, lambda i: (0, 0)),
        ],
        out_specs=pl.BlockSpec((bb, O), lambda i: (i, 0)),
        compiler_params=pltpu.CompilerParams(
            dimension_semantics=("parallel",)),
    )(x_tm, w_ih, w_hh, w_mlp, bias)


def init_params(key, n_features, n_hidden, n_outputs, sequence_len,
                n_deep_layers, matmul_dtype=jnp.bfloat16):
    # Weights pre-transposed to (in, out); b_ih + b_hh pre-fused.  Any import
    # path from a real PyTorch state_dict must replicate this transpose / fuse /
    # packing or results will be silently wrong.
    H, F, T, O, L = n_hidden, n_features, sequence_len, n_outputs, n_deep_layers
    assert O <= H, "final-layer packing assumes n_outputs <= n_hidden"
    ks = jax.random.split(key, 9)
    s = float(1.0 / (H ** 0.5))
    u = lambda k, shape: jax.random.uniform(k, shape, jnp.float32, -s, s)

    w_ih = u(ks[0], (F, 4 * H))
    w_hh = u(ks[1], (H, 4 * H))
    b_lstm = u(ks[2], (1, 4 * H))            # b_ih + b_hh fused
    w1 = u(ks[3], (T * H, H))                # fc1
    b1 = u(ks[4], (1, H))
    wd = u(ks[5], (L - 1, H, H))             # deep hidden Linear(H, H) layers
    bd = u(ks[6], (L - 1, 1, H))
    w_f = u(ks[7], (H, O))                   # final Linear(H, n_outputs)
    b_f = u(ks[8], (1, O))

    # Pack small operands to cut prologue DMA descriptors (10 -> 5).
    w_f_pad = jnp.zeros((H, H), jnp.float32).at[:, :O].set(w_f)
    w_mlp = jnp.concatenate([w1, wd.reshape((L - 1) * H, H), w_f_pad], axis=0)
    bias = jnp.concatenate([b_lstm, b1, bd.reshape(1, (L - 1) * H), b_f], axis=1)
    return {
        "w_ih": w_ih.astype(matmul_dtype),
        "w_hh": w_hh.astype(matmul_dtype),
        "w_mlp": w_mlp.astype(matmul_dtype),
        "bias": bias,                        # biases stay f32
    }


def reference_forward(x, params):
    # Pure-JAX (XLA) reference with the same operand-dtype cast points as the
    # kernel; numerical sanity check only.
    w_ih, w_hh = params["w_ih"], params["w_hh"]
    w_mlp, bias = params["w_mlp"], params["bias"]
    B, T, F = x.shape
    H = w_hh.shape[0]
    L = w_mlp.shape[0] // H - T
    O = bias.shape[1] - (4 + L) * H
    cdt = w_ih.dtype
    f32 = lambda a: a.astype(jnp.float32)

    xc = f32(x.astype(cdt))
    h = jnp.zeros((B, H), jnp.float32)
    c = jnp.zeros((B, H), jnp.float32)
    acc = jnp.zeros((B, H), jnp.float32)
    for t in range(T):
        gates = (xc[:, t, :] @ f32(w_ih) + bias[:, :4 * H]
                 + f32(h.astype(cdt)) @ f32(w_hh))
        i_g = jax.nn.sigmoid(gates[:, :H])
        f_g = jax.nn.sigmoid(gates[:, H:2 * H])
        g_g = jnp.tanh(gates[:, 2 * H:3 * H])
        o_g = jax.nn.sigmoid(gates[:, 3 * H:])
        c = f_g * c + i_g * g_g
        h = o_g * jnp.tanh(c)
        acc = acc + f32(h.astype(cdt)) @ f32(w_mlp[t * H:(t + 1) * H])
    act = acc + bias[:, 4 * H:5 * H]
    for li in range(L - 1):
        act = (f32(jax.nn.relu(act).astype(cdt))
               @ f32(w_mlp[(T + li) * H:(T + li + 1) * H])
               + bias[:, (5 + li) * H:(6 + li) * H])
    final = (f32(jax.nn.relu(act).astype(cdt))
             @ f32(w_mlp[(T + L - 1) * H:(T + L) * H]))
    return final[:, :O] + bias[:, (4 + L) * H:]


if __name__ == "__main__":
    B, T, F, H, O = 8, 8, 4, 32, 1
    n_deep_layers = 4

    key = jax.random.PRNGKey(0)
    k_param, k_x = jax.random.split(key)
    params = init_params(k_param, n_features=F, n_hidden=H, n_outputs=O,
                         sequence_len=T, n_deep_layers=n_deep_layers)
    x = jax.random.normal(k_x, (B, T, F), jnp.float32)

    out = jax.jit(lstm_forecaster_forward)(x, params)
    jax.block_until_ready(out)
    assert out.shape == (B, O) and out.dtype == jnp.float32

    ref = reference_forward(x, params)
    assert jnp.allclose(out, ref, atol=1e-2, rtol=1e-2), (out, ref)

    print("KERNEL_OK")
</pallas_src>

<mosaic_0001>
module attributes {stable_mosaic.version = 11 : i64} {
  func.func @fused_lstm_mlp_kernel(%arg0: i32, %arg1: memref<8x8x4xbf16, #tpu.memory_space<vmem>>, %arg2: memref<4x128xbf16, #tpu.memory_space<vmem>>, %arg3: memref<32x128xbf16, #tpu.memory_space<vmem>>, %arg4: memref<384x32xbf16, #tpu.memory_space<vmem>>, %arg5: memref<1x257xf32, #tpu.memory_space<vmem>>, %arg6: memref<8x1xf32, #tpu.memory_space<vmem>>) attributes {dimension_semantics = [#tpu.dimension_semantics<parallel>], iteration_bounds = array<i64: 1>, scalar_prefetch = 0 : i64, scratch_operands = 0 : i64, tpu.core_type = #tpu.core_type<tc>, window_params = [{transform_indices = @transform_0, window_bounds = array<i64: 8, 8, 4>}, {pipeline_mode = #tpu.pipeline_mode<synchronous>, transform_indices = @transform_1, window_bounds = array<i64: 4, 128>}, {pipeline_mode = #tpu.pipeline_mode<synchronous>, transform_indices = @transform_2, window_bounds = array<i64: 32, 128>}, {pipeline_mode = #tpu.pipeline_mode<synchronous>, transform_indices = @transform_3, window_bounds = array<i64: 384, 32>}, {pipeline_mode = #tpu.pipeline_mode<synchronous>, transform_indices = @transform_4, window_bounds = array<i64: 1, 257>}, {transform_indices = @transform_5, window_bounds = array<i64: 8, 1>}]} {
    %c0 = arith.constant 0 : index
    %c0_0 = arith.constant 0 : index
    %0 = vector.load %arg3[%c0, %c0_0] : memref<32x128xbf16, #tpu.memory_space<vmem>>, vector<32x128xbf16>
    %c0_1 = arith.constant 0 : index
    %c0_2 = arith.constant 0 : index
    %c0_3 = arith.constant 0 : index
    %1 = vector.load %arg1[%c0_1, %c0_2, %c0_3] : memref<8x8x4xbf16, #tpu.memory_space<vmem>>, vector<8x8x4xbf16>
    %2 = vector.shape_cast %1 : vector<8x8x4xbf16> to vector<64x4xbf16>
    %c0_4 = arith.constant 0 : index
    %c0_5 = arith.constant 0 : index
    %3 = vector.load %arg2[%c0_4, %c0_5] : memref<4x128xbf16, #tpu.memory_space<vmem>>, vector<4x128xbf16>
    %cst = arith.constant dense<0.000000e+00> : vector<64x128xf32>
    %4 = tpu.matmul %2, %3, %cst {dimension_numbers = #tpu.dot_dimension_numbers<[1], [0], [0], [1], [0, 0, 1, 1], [], []>} : vector<64x4xbf16>, vector<4x128xbf16>, vector<64x128xf32> -> vector<64x128xf32>
    %c0_6 = arith.constant 0 : index
    %c0_7 = arith.constant 0 : index
    %5 = vector.load %arg5[%c0_6, %c0_7] : memref<1x257xf32, #tpu.memory_space<vmem>>, vector<1x128xf32>
    %6 = vector.broadcast %5 : vector<1x128xf32> to vector<64x128xf32>
    %7 = arith.addf %4, %6 : vector<64x128xf32>
    %cst_8 = arith.constant 0.000000e+00 : f32
    %8 = vector.broadcast %cst_8 : f32 to vector<8x32xf32>
    %cst_9 = arith.constant 0.000000e+00 : f32
    %9 = vector.broadcast %cst_9 : f32 to vector<8x32xf32>
    %cst_10 = arith.constant 0.000000e+00 : f32
    %10 = vector.broadcast %cst_10 : f32 to vector<8x32xf32>
    %11 = vector.extract_strided_slice %7 {offsets = [0, 0], sizes = [8, 128], strides = [1, 1]} : vector<64x128xf32> to vector<8x128xf32>
    %12 = arith.truncf %8 : vector<8x32xf32> to vector<8x32xbf16>
    %cst_11 = arith.constant dense<0.000000e+00> : vector<8x128xf32>
    %13 = tpu.matmul %12, %0, %cst_11 {dimension_numbers = #tpu.dot_dimension_numbers<[1], [0], [0], [1], [0, 0, 1, 1], [], []>} : vector<8x32xbf16>, vector<32x128xbf16>, vector<8x128xf32> -> vector<8x128xf32>
    %14 = arith.addf %11, %13 : vector<8x128xf32>
    %15 = vector.extract_strided_slice %14 {offsets = [0, 0], sizes = [8, 32], strides = [1, 1]} : vector<8x128xf32> to vector<8x32xf32>
    %16 = arith.negf %15 : vector<8x32xf32>
    %17 = math.exp %16 : vector<8x32xf32>
    %cst_12 = arith.constant 1.000000e+00 : f32
    %18 = vector.broadcast %cst_12 : f32 to vector<8x32xf32>
    %19 = arith.addf %18, %17 : vector<8x32xf32>
    %20 = arith.divf %18, %19 : vector<8x32xf32>
    %21 = vector.extract_strided_slice %14 {offsets = [0, 32], sizes = [8, 32], strides = [1, 1]} : vector<8x128xf32> to vector<8x32xf32>
    %22 = arith.negf %21 : vector<8x32xf32>
    %23 = math.exp %22 : vector<8x32xf32>
    %cst_13 = arith.constant 1.000000e+00 : f32
    %24 = vector.broadcast %cst_13 : f32 to vector<8x32xf32>
    %25 = arith.addf %24, %23 : vector<8x32xf32>
    %26 = arith.divf %24, %25 : vector<8x32xf32>
    %27 = vector.extract_strided_slice %14 {offsets = [0, 64], sizes = [8, 32], strides = [1, 1]} : vector<8x128xf32> to vector<8x32xf32>
    %28 = math.tanh %27 : vector<8x32xf32>
    %29 = vector.extract_strided_slice %14 {offsets = [0, 96], sizes = [8, 32], strides = [1, 1]} : vector<8x128xf32> to vector<8x32xf32>
    %30 = arith.negf %29 : vector<8x32xf32>
    %31 = math.exp %30 : vector<8x32xf32>
    %cst_14 = arith.constant 1.000000e+00 : f32
    %32 = vector.broadcast %cst_14 : f32 to vector<8x32xf32>
    %33 = arith.addf %32, %31 : vector<8x32xf32>
    %34 = arith.divf %32, %33 : vector<8x32xf32>
    %35 = arith.mulf %26, %9 : vector<8x32xf32>
    %36 = arith.mulf %20, %28 : vector<8x32xf32>
    %37 = arith.addf %35, %36 : vector<8x32xf32>
    %38 = math.tanh %37 : vector<8x32xf32>
    %39 = arith.mulf %34, %38 : vector<8x32xf32>
    %40 = arith.truncf %39 : vector<8x32xf32> to vector<8x32xbf16>
    %c0_15 = arith.constant 0 : index
    %c0_16 = arith.constant 0 : index
    %41 = vector.load %arg4[%c0_15, %c0_16] : memref<384x32xbf16, #tpu.memory_space<vmem>>, vector<32x32xbf16>
    %cst_17 = arith.constant dense<0.000000e+00> : vector<8x32xf32>
    %42 = tpu.matmul %40, %41, %cst_17 {dimension_numbers = #tpu.dot_dimension_numbers<[1], [0], [0], [1], [0, 0, 1, 1], [], []>} : vector<8x32xbf16>, vector<32x32xbf16>, vector<8x32xf32> -> vector<8x32xf32>
    %43 = arith.addf %10, %42 : vector<8x32xf32>
    %44 = vector.extract_strided_slice %7 {offsets = [8, 0], sizes = [8, 128], strides = [1, 1]} : vector<64x128xf32> to vector<8x128xf32>
    %45 = arith.truncf %39 : vector<8x32xf32> to vector<8x32xbf16>
    %cst_18 = arith.constant dense<0.000000e+00> : vector<8x128xf32>
    %46 = tpu.matmul %45, %0, %cst_18 {dimension_numbers = #tpu.dot_dimension_numbers<[1], [0], [0], [1], [0, 0, 1, 1], [], []>} : vector<8x32xbf16>, vector<32x128xbf16>, vector<8x128xf32> -> vector<8x128xf32>
    %47 = arith.addf %44, %46 : vector<8x128xf32>
    %48 = vector.extract_strided_slice %47 {offsets = [0, 0], sizes = [8, 32], strides = [1, 1]} : vector<8x128xf32> to vector<8x32xf32>
    %49 = arith.negf %48 : vector<8x32xf32>
    %50 = math.exp %49 : vector<8x32xf32>
    %cst_19 = arith.constant 1.000000e+00 : f32
    %51 = vector.broadcast %cst_19 : f32 to vector<8x32xf32>
    %52 = arith.addf %51, %50 : vector<8x32xf32>
    %53 = arith.divf %51, %52 : vector<8x32xf32>
    %54 = vector.extract_strided_slice %47 {offsets = [0, 32], sizes = [8, 32], strides = [1, 1]} : vector<8x128xf32> to vector<8x32xf32>
    %55 = arith.negf %54 : vector<8x32xf32>
    %56 = math.exp %55 : vector<8x32xf32>
    %cst_20 = arith.constant 1.000000e+00 : f32
    %57 = vector.broadcast %cst_20 : f32 to vector<8x32xf32>
    %58 = arith.addf %57, %56 : vector<8x32xf32>
    %59 = arith.divf %57, %58 : vector<8x32xf32>
    %60 = vector.extract_strided_slice %47 {offsets = [0, 64], sizes = [8, 32], strides = [1, 1]} : vector<8x128xf32> to vector<8x32xf32>
    %61 = math.tanh %60 : vector<8x32xf32>
    %62 = vector.extract_strided_slice %47 {offsets = [0, 96], sizes = [8, 32], strides = [1, 1]} : vector<8x128xf32> to vector<8x32xf32>
    %63 = arith.negf %62 : vector<8x32xf32>
    %64 = math.exp %63 : vector<8x32xf32>
    %cst_21 = arith.constant 1.000000e+00 : f32
    %65 = vector.broadcast %cst_21 : f32 to vector<8x32xf32>
    %66 = arith.addf %65, %64 : vector<8x32xf32>
    %67 = arith.divf %65, %66 : vector<8x32xf32>
    %68 = arith.mulf %59, %37 : vector<8x32xf32>
    %69 = arith.mulf %53, %61 : vector<8x32xf32>
    %70 = arith.addf %68, %69 : vector<8x32xf32>
    %71 = math.tanh %70 : vector<8x32xf32>
    %72 = arith.mulf %67, %71 : vector<8x32xf32>
    %73 = arith.truncf %72 : vector<8x32xf32> to vector<8x32xbf16>
    %c32 = arith.constant 32 : index
    %c0_22 = arith.constant 0 : index
    %74 = vector.load %arg4[%c32, %c0_22] : memref<384x32xbf16, #tpu.memory_space<vmem>>, vector<32x32xbf16>
    %cst_23 = arith.constant dense<0.000000e+00> : vector<8x32xf32>
    %75 = tpu.matmul %73, %74, %cst_23 {dimension_numbers = #tpu.dot_dimension_numbers<[1], [0], [0], [1], [0, 0, 1, 1], [], []>} : vector<8x32xbf16>, vector<32x32xbf16>, vector<8x32xf32> -> vector<8x32xf32>
    %76 = arith.addf %43, %75 : vector<8x32xf32>
    %77 = vector.extract_strided_slice %7 {offsets = [16, 0], sizes = [8, 128], strides = [1, 1]} : vector<64x128xf32> to vector<8x128xf32>
    %78 = arith.truncf %72 : vector<8x32xf32> to vector<8x32xbf16>
    %cst_24 = arith.constant dense<0.000000e+00> : vector<8x128xf32>
    %79 = tpu.matmul %78, %0, %cst_24 {dimension_numbers = #tpu.dot_dimension_numbers<[1], [0], [0], [1], [0, 0, 1, 1], [], []>} : vector<8x32xbf16>, vector<32x128xbf16>, vector<8x128xf32> -> vector<8x128xf32>
    %80 = arith.addf %77, %79 : vector<8x128xf32>
    %81 = vector.extract_strided_slice %80 {offsets = [0, 0], sizes = [8, 32], strides = [1, 1]} : vector<8x128xf32> to vector<8x32xf32>
    %82 = arith.negf %81 : vector<8x32xf32>
    %83 = math.exp %82 : vector<8x32xf32>
    %cst_25 = arith.constant 1.000000e+00 : f32
    %84 = vector.broadcast %cst_25 : f32 to vector<8x32xf32>
    %85 = arith.addf %84, %83 : vector<8x32xf32>
    %86 = arith.divf %84, %85 : vector<8x32xf32>
    %87 = vector.extract_strided_slice %80 {offsets = [0, 32], sizes = [8, 32], strides = [1, 1]} : vector<8x128xf32> to vector<8x32xf32>
    %88 = arith.negf %87 : vector<8x32xf32>
    %89 = math.exp %88 : vector<8x32xf32>
    %cst_26 = arith.constant 1.000000e+00 : f32
    %90 = vector.broadcast %cst_26 : f32 to vector<8x32xf32>
    %91 = arith.addf %90, %89 : vector<8x32xf32>
    %92 = arith.divf %90, %91 : vector<8x32xf32>
    %93 = vector.extract_strided_slice %80 {offsets = [0, 64], sizes = [8, 32], strides = [1, 1]} : vector<8x128xf32> to vector<8x32xf32>
    %94 = math.tanh %93 : vector<8x32xf32>
    %95 = vector.extract_strided_slice %80 {offsets = [0, 96], sizes = [8, 32], strides = [1, 1]} : vector<8x128xf32> to vector<8x32xf32>
    %96 = arith.negf %95 : vector<8x32xf32>
    %97 = math.exp %96 : vector<8x32xf32>
    %cst_27 = arith.constant 1.000000e+00 : f32
    %98 = vector.broadcast %cst_27 : f32 to vector<8x32xf32>
    %99 = arith.addf %98, %97 : vector<8x32xf32>
    %100 = arith.divf %98, %99 : vector<8x32xf32>
    %101 = arith.mulf %92, %70 : vector<8x32xf32>
    %102 = arith.mulf %86, %94 : vector<8x32xf32>
    %103 = arith.addf %101, %102 : vector<8x32xf32>
    %104 = math.tanh %103 : vector<8x32xf32>
    %105 = arith.mulf %100, %104 : vector<8x32xf32>
    %106 = arith.truncf %105 : vector<8x32xf32> to vector<8x32xbf16>
    %c64 = arith.constant 64 : index
    %c0_28 = arith.constant 0 : index
    %107 = vector.load %arg4[%c64, %c0_28] : memref<384x32xbf16, #tpu.memory_space<vmem>>, vector<32x32xbf16>
    %cst_29 = arith.constant dense<0.000000e+00> : vector<8x32xf32>
    %108 = tpu.matmul %106, %107, %cst_29 {dimension_numbers = #tpu.dot_dimension_numbers<[1], [0], [0], [1], [0, 0, 1, 1], [], []>} : vector<8x32xbf16>, vector<32x32xbf16>, vector<8x32xf32> -> vector<8x32xf32>
    %109 = arith.addf %76, %108 : vector<8x32xf32>
    %110 = vector.extract_strided_slice %7 {offsets = [24, 0], sizes = [8, 128], strides = [1, 1]} : vector<64x128xf32> to vector<8x128xf32>
    %111 = arith.truncf %105 : vector<8x32xf32> to vector<8x32xbf16>
    %cst_30 = arith.constant dense<0.000000e+00> : vector<8x128xf32>
    %112 = tpu.matmul %111, %0, %cst_30 {dimension_numbers = #tpu.dot_dimension_numbers<[1], [0], [0], [1], [0, 0, 1, 1], [], []>} : vector<8x32xbf16>, vector<32x128xbf16>, vector<8x128xf32> -> vector<8x128xf32>
    %113 = arith.addf %110, %112 : vector<8x128xf32>
    %114 = vector.extract_strided_slice %113 {offsets = [0, 0], sizes = [8, 32], strides = [1, 1]} : vector<8x128xf32> to vector<8x32xf32>
    %115 = arith.negf %114 : vector<8x32xf32>
    %116 = math.exp %115 : vector<8x32xf32>
    %cst_31 = arith.constant 1.000000e+00 : f32
    %117 = vector.broadcast %cst_31 : f32 to vector<8x32xf32>
    %118 = arith.addf %117, %116 : vector<8x32xf32>
    %119 = arith.divf %117, %118 : vector<8x32xf32>
    %120 = vector.extract_strided_slice %113 {offsets = [0, 32], sizes = [8, 32], strides = [1, 1]} : vector<8x128xf32> to vector<8x32xf32>
    %121 = arith.negf %120 : vector<8x32xf32>
    %122 = math.exp %121 : vector<8x32xf32>
    %cst_32 = arith.constant 1.000000e+00 : f32
    %123 = vector.broadcast %cst_32 : f32 to vector<8x32xf32>
    %124 = arith.addf %123, %122 : vector<8x32xf32>
    %125 = arith.divf %123, %124 : vector<8x32xf32>
    %126 = vector.extract_strided_slice %113 {offsets = [0, 64], sizes = [8, 32], strides = [1, 1]} : vector<8x128xf32> to vector<8x32xf32>
    %127 = math.tanh %126 : vector<8x32xf32>
    %128 = vector.extract_strided_slice %113 {offsets = [0, 96], sizes = [8, 32], strides = [1, 1]} : vector<8x128xf32> to vector<8x32xf32>
    %129 = arith.negf %128 : vector<8x32xf32>
    %130 = math.exp %129 : vector<8x32xf32>
    %cst_33 = arith.constant 1.000000e+00 : f32
    %131 = vector.broadcast %cst_33 : f32 to vector<8x32xf32>
    %132 = arith.addf %131, %130 : vector<8x32xf32>
    %133 = arith.divf %131, %132 : vector<8x32xf32>
    %134 = arith.mulf %125, %103 : vector<8x32xf32>
    %135 = arith.mulf %119, %127 : vector<8x32xf32>
    %136 = arith.addf %134, %135 : vector<8x32xf32>
    %137 = math.tanh %136 : vector<8x32xf32>
    %138 = arith.mulf %133, %137 : vector<8x32xf32>
    %139 = arith.truncf %138 : vector<8x32xf32> to vector<8x32xbf16>
    %c96 = arith.constant 96 : index
    %c0_34 = arith.constant 0 : index
    %140 = vector.load %arg4[%c96, %c0_34] : memref<384x32xbf16, #tpu.memory_space<vmem>>, vector<32x32xbf16>
    %cst_35 = arith.constant dense<0.000000e+00> : vector<8x32xf32>
    %141 = tpu.matmul %139, %140, %cst_35 {dimension_numbers = #tpu.dot_dimension_numbers<[1], [0], [0], [1], [0, 0, 1, 1], [], []>} : vector<8x32xbf16>, vector<32x32xbf16>, vector<8x32xf32> -> vector<8x32xf32>
    %142 = arith.addf %109, %141 : vector<8x32xf32>
    %143 = vector.extract_strided_slice %7 {offsets = [32, 0], sizes = [8, 128], strides = [1, 1]} : vector<64x128xf32> to vector<8x128xf32>
    %144 = arith.truncf %138 : vector<8x32xf32> to vector<8x32xbf16>
    %cst_36 = arith.constant dense<0.000000e+00> : vector<8x128xf32>
    %145 = tpu.matmul %144, %0, %cst_36 {dimension_numbers = #tpu.dot_dimension_numbers<[1], [0], [0], [1], [0, 0, 1, 1], [], []>} : vector<8x32xbf16>, vector<32x128xbf16>, vector<8x128xf32> -> vector<8x128xf32>
    %146 = arith.addf %143, %145 : vector<8x128xf32>
    %147 = vector.extract_strided_slice %146 {offsets = [0, 0], sizes = [8, 32], strides = [1, 1]} : vector<8x128xf32> to vector<8x32xf32>
    %148 = arith.negf %147 : vector<8x32xf32>
    %149 = math.exp %148 : vector<8x32xf32>
    %cst_37 = arith.constant 1.000000e+00 : f32
    %150 = vector.broadcast %cst_37 : f32 to vector<8x32xf32>
    %151 = arith.addf %150, %149 : vector<8x32xf32>
    %152 = arith.divf %150, %151 : vector<8x32xf32>
    %153 = vector.extract_strided_slice %146 {offsets = [0, 32], sizes = [8, 32], strides = [1, 1]} : vector<8x128xf32> to vector<8x32xf32>
    %154 = arith.negf %153 : vector<8x32xf32>
    %155 = math.exp %154 : vector<8x32xf32>
    %cst_38 = arith.constant 1.000000e+00 : f32
    %156 = vector.broadcast %cst_38 : f32 to vector<8x32xf32>
    %157 = arith.addf %156, %155 : vector<8x32xf32>
    %158 = arith.divf %156, %157 : vector<8x32xf32>
    %159 = vector.extract_strided_slice %146 {offsets = [0, 64], sizes = [8, 32], strides = [1, 1]} : vector<8x128xf32> to vector<8x32xf32>
    %160 = math.tanh %159 : vector<8x32xf32>
    %161 = vector.extract_strided_slice %146 {offsets = [0, 96], sizes = [8, 32], strides = [1, 1]} : vector<8x128xf32> to vector<8x32xf32>
    %162 = arith.negf %161 : vector<8x32xf32>
    %163 = math.exp %162 : vector<8x32xf32>
    %cst_39 = arith.constant 1.000000e+00 : f32
    %164 = vector.broadcast %cst_39 : f32 to vector<8x32xf32>
    %165 = arith.addf %164, %163 : vector<8x32xf32>
    %166 = arith.divf %164, %165 : vector<8x32xf32>
    %167 = arith.mulf %158, %136 : vector<8x32xf32>
    %168 = arith.mulf %152, %160 : vector<8x32xf32>
    %169 = arith.addf %167, %168 : vector<8x32xf32>
    %170 = math.tanh %169 : vector<8x32xf32>
    %171 = arith.mulf %166, %170 : vector<8x32xf32>
    %172 = arith.truncf %171 : vector<8x32xf32> to vector<8x32xbf16>
    %c128 = arith.constant 128 : index
    %c0_40 = arith.constant 0 : index
    %173 = vector.load %arg4[%c128, %c0_40] : memref<384x32xbf16, #tpu.memory_space<vmem>>, vector<32x32xbf16>
    %cst_41 = arith.constant dense<0.000000e+00> : vector<8x32xf32>
    %174 = tpu.matmul %172, %173, %cst_41 {dimension_numbers = #tpu.dot_dimension_numbers<[1], [0], [0], [1], [0, 0, 1, 1], [], []>} : vector<8x32xbf16>, vector<32x32xbf16>, vector<8x32xf32> -> vector<8x32xf32>
    %175 = arith.addf %142, %174 : vector<8x32xf32>
    %176 = vector.extract_strided_slice %7 {offsets = [40, 0], sizes = [8, 128], strides = [1, 1]} : vector<64x128xf32> to vector<8x128xf32>
    %177 = arith.truncf %171 : vector<8x32xf32> to vector<8x32xbf16>
    %cst_42 = arith.constant dense<0.000000e+00> : vector<8x128xf32>
    %178 = tpu.matmul %177, %0, %cst_42 {dimension_numbers = #tpu.dot_dimension_numbers<[1], [0], [0], [1], [0, 0, 1, 1], [], []>} : vector<8x32xbf16>, vector<32x128xbf16>, vector<8x128xf32> -> vector<8x128xf32>
    %179 = arith.addf %176, %178 : vector<8x128xf32>
    %180 = vector.extract_strided_slice %179 {offsets = [0, 0], sizes = [8, 32], strides = [1, 1]} : vector<8x128xf32> to vector<8x32xf32>
    %181 = arith.negf %180 : vector<8x32xf32>
    %182 = math.exp %181 : vector<8x32xf32>
    %cst_43 = arith.constant 1.000000e+00 : f32
    %183 = vector.broadcast %cst_43 : f32 to vector<8x32xf32>
    %184 = arith.addf %183, %182 : vector<8x32xf32>
    %185 = arith.divf %183, %184 : vector<8x32xf32>
    %186 = vector.extract_strided_slice %179 {offsets = [0, 32], sizes = [8, 32], strides = [1, 1]} : vector<8x128xf32> to vector<8x32xf32>
    %187 = arith.negf %186 : vector<8x32xf32>
    %188 = math.exp %187 : vector<8x32xf32>
    %cst_44 = arith.constant 1.000000e+00 : f32
    %189 = vector.broadcast %cst_44 : f32 to vector<8x32xf32>
    %190 = arith.addf %189, %188 : vector<8x32xf32>
    %191 = arith.divf %189, %190 : vector<8x32xf32>
    %192 = vector.extract_strided_slice %179 {offsets = [0, 64], sizes = [8, 32], strides = [1, 1]} : vector<8x128xf32> to vector<8x32xf32>
    %193 = math.tanh %192 : vector<8x32xf32>
    %194 = vector.extract_strided_slice %179 {offsets = [0, 96], sizes = [8, 32], strides = [1, 1]} : vector<8x128xf32> to vector<8x32xf32>
    %195 = arith.negf %194 : vector<8x32xf32>
    %196 = math.exp %195 : vector<8x32xf32>
    %cst_45 = arith.constant 1.000000e+00 : f32
    %197 = vector.broadcast %cst_45 : f32 to vector<8x32xf32>
    %198 = arith.addf %197, %196 : vector<8x32xf32>
    %199 = arith.divf %197, %198 : vector<8x32xf32>
    %200 = arith.mulf %191, %169 : vector<8x32xf32>
    %201 = arith.mulf %185, %193 : vector<8x32xf32>
    %202 = arith.addf %200, %201 : vector<8x32xf32>
    %203 = math.tanh %202 : vector<8x32xf32>
    %204 = arith.mulf %199, %203 : vector<8x32xf32>
    %205 = arith.truncf %204 : vector<8x32xf32> to vector<8x32xbf16>
    %c160 = arith.constant 160 : index
    %c0_46 = arith.constant 0 : index
    %206 = vector.load %arg4[%c160, %c0_46] : memref<384x32xbf16, #tpu.memory_space<vmem>>, vector<32x32xbf16>
    %cst_47 = arith.constant dense<0.000000e+00> : vector<8x32xf32>
    %207 = tpu.matmul %205, %206, %cst_47 {dimension_numbers = #tpu.dot_dimension_numbers<[1], [0], [0], [1], [0, 0, 1, 1], [], []>} : vector<8x32xbf16>, vector<32x32xbf16>, vector<8x32xf32> -> vector<8x32xf32>
    %208 = arith.addf %175, %207 : vector<8x32xf32>
    %209 = vector.extract_strided_slice %7 {offsets = [48, 0], sizes = [8, 128], strides = [1, 1]} : vector<64x128xf32> to vector<8x128xf32>
    %210 = arith.truncf %204 : vector<8x32xf32> to vector<8x32xbf16>
    %cst_48 = arith.constant dense<0.000000e+00> : vector<8x128xf32>
    %211 = tpu.matmul %210, %0, %cst_48 {dimension_numbers = #tpu.dot_dimension_numbers<[1], [0], [0], [1], [0, 0, 1, 1], [], []>} : vector<8x32xbf16>, vector<32x128xbf16>, vector<8x128xf32> -> vector<8x128xf32>
    %212 = arith.addf %209, %211 : vector<8x128xf32>
    %213 = vector.extract_strided_slice %212 {offsets = [0, 0], sizes = [8, 32], strides = [1, 1]} : vector<8x128xf32> to vector<8x32xf32>
    %214 = arith.negf %213 : vector<8x32xf32>
    %215 = math.exp %214 : vector<8x32xf32>
    %cst_49 = arith.constant 1.000000e+00 : f32
    %216 = vector.broadcast %cst_49 : f32 to vector<8x32xf32>
    %217 = arith.addf %216, %215 : vector<8x32xf32>
    %218 = arith.divf %216, %217 : vector<8x32xf32>
    %219 = vector.extract_strided_slice %212 {offsets = [0, 32], sizes = [8, 32], strides = [1, 1]} : vector<8x128xf32> to vector<8x32xf32>
    %220 = arith.negf %219 : vector<8x32xf32>
    %221 = math.exp %220 : vector<8x32xf32>
    %cst_50 = arith.constant 1.000000e+00 : f32
    %222 = vector.broadcast %cst_50 : f32 to vector<8x32xf32>
    %223 = arith.addf %222, %221 : vector<8x32xf32>
    %224 = arith.divf %222, %223 : vector<8x32xf32>
    %225 = vector.extract_strided_slice %212 {offsets = [0, 64], sizes = [8, 32], strides = [1, 1]} : vector<8x128xf32> to vector<8x32xf32>
    %226 = math.tanh %225 : vector<8x32xf32>
    %227 = vector.extract_strided_slice %212 {offsets = [0, 96], sizes = [8, 32], strides = [1, 1]} : vector<8x128xf32> to vector<8x32xf32>
    %228 = arith.negf %227 : vector<8x32xf32>
    %229 = math.exp %228 : vector<8x32xf32>
    %cst_51 = arith.constant 1.000000e+00 : f32
    %230 = vector.broadcast %cst_51 : f32 to vector<8x32xf32>
    %231 = arith.addf %230, %229 : vector<8x32xf32>
    %232 = arith.divf %230, %231 : vector<8x32xf32>
    %233 = arith.mulf %224, %202 : vector<8x32xf32>
    %234 = arith.mulf %218, %226 : vector<8x32xf32>
    %235 = arith.addf %233, %234 : vector<8x32xf32>
    %236 = math.tanh %235 : vector<8x32xf32>
    %237 = arith.mulf %232, %236 : vector<8x32xf32>
    %238 = arith.truncf %237 : vector<8x32xf32> to vector<8x32xbf16>
    %c192 = arith.constant 192 : index
    %c0_52 = arith.constant 0 : index
    %239 = vector.load %arg4[%c192, %c0_52] : memref<384x32xbf16, #tpu.memory_space<vmem>>, vector<32x32xbf16>
    %cst_53 = arith.constant dense<0.000000e+00> : vector<8x32xf32>
    %240 = tpu.matmul %238, %239, %cst_53 {dimension_numbers = #tpu.dot_dimension_numbers<[1], [0], [0], [1], [0, 0, 1, 1], [], []>} : vector<8x32xbf16>, vector<32x32xbf16>, vector<8x32xf32> -> vector<8x32xf32>
    %241 = arith.addf %208, %240 : vector<8x32xf32>
    %242 = vector.extract_strided_slice %7 {offsets = [56, 0], sizes = [8, 128], strides = [1, 1]} : vector<64x128xf32> to vector<8x128xf32>
    %243 = arith.truncf %237 : vector<8x32xf32> to vector<8x32xbf16>
    %cst_54 = arith.constant dense<0.000000e+00> : vector<8x128xf32>
    %244 = tpu.matmul %243, %0, %cst_54 {dimension_numbers = #tpu.dot_dimension_numbers<[1], [0], [0], [1], [0, 0, 1, 1], [], []>} : vector<8x32xbf16>, vector<32x128xbf16>, vector<8x128xf32> -> vector<8x128xf32>
    %245 = arith.addf %242, %244 : vector<8x128xf32>
    %246 = vector.extract_strided_slice %245 {offsets = [0, 0], sizes = [8, 32], strides = [1, 1]} : vector<8x128xf32> to vector<8x32xf32>
    %247 = arith.negf %246 : vector<8x32xf32>
    %248 = math.exp %247 : vector<8x32xf32>
    %cst_55 = arith.constant 1.000000e+00 : f32
    %249 = vector.broadcast %cst_55 : f32 to vector<8x32xf32>
    %250 = arith.addf %249, %248 : vector<8x32xf32>
    %251 = arith.divf %249, %250 : vector<8x32xf32>
    %252 = vector.extract_strided_slice %245 {offsets = [0, 32], sizes = [8, 32], strides = [1, 1]} : vector<8x128xf32> to vector<8x32xf32>
    %253 = arith.negf %252 : vector<8x32xf32>
    %254 = math.exp %253 : vector<8x32xf32>
    %cst_56 = arith.constant 1.000000e+00 : f32
    %255 = vector.broadcast %cst_56 : f32 to vector<8x32xf32>
    %256 = arith.addf %255, %254 : vector<8x32xf32>
    %257 = arith.divf %255, %256 : vector<8x32xf32>
    %258 = vector.extract_strided_slice %245 {offsets = [0, 64], sizes = [8, 32], strides = [1, 1]} : vector<8x128xf32> to vector<8x32xf32>
    %259 = math.tanh %258 : vector<8x32xf32>
    %260 = vector.extract_strided_slice %245 {offsets = [0, 96], sizes = [8, 32], strides = [1, 1]} : vector<8x128xf32> to vector<8x32xf32>
    %261 = arith.negf %260 : vector<8x32xf32>
    %262 = math.exp %261 : vector<8x32xf32>
    %cst_57 = arith.constant 1.000000e+00 : f32
    %263 = vector.broadcast %cst_57 : f32 to vector<8x32xf32>
    %264 = arith.addf %263, %262 : vector<8x32xf32>
    %265 = arith.divf %263, %264 : vector<8x32xf32>
    %266 = arith.mulf %257, %235 : vector<8x32xf32>
    %267 = arith.mulf %251, %259 : vector<8x32xf32>
    %268 = arith.addf %266, %267 : vector<8x32xf32>
    %269 = math.tanh %268 : vector<8x32xf32>
    %270 = arith.mulf %265, %269 : vector<8x32xf32>
    %271 = arith.truncf %270 : vector<8x32xf32> to vector<8x32xbf16>
    %c224 = arith.constant 224 : index
    %c0_58 = arith.constant 0 : index
    %272 = vector.load %arg4[%c224, %c0_58] : memref<384x32xbf16, #tpu.memory_space<vmem>>, vector<32x32xbf16>
    %cst_59 = arith.constant dense<0.000000e+00> : vector<8x32xf32>
    %273 = tpu.matmul %271, %272, %cst_59 {dimension_numbers = #tpu.dot_dimension_numbers<[1], [0], [0], [1], [0, 0, 1, 1], [], []>} : vector<8x32xbf16>, vector<32x32xbf16>, vector<8x32xf32> -> vector<8x32xf32>
    %274 = arith.addf %241, %273 : vector<8x32xf32>
    %c0_60 = arith.constant 0 : index
    %c128_61 = arith.constant 128 : index
    %275 = vector.load %arg5[%c0_60, %c128_61] : memref<1x257xf32, #tpu.memory_space<vmem>>, vector<1x32xf32>
    %276 = vector.broadcast %275 : vector<1x32xf32> to vector<8x32xf32>
    %277 = arith.addf %274, %276 : vector<8x32xf32>
    %cst_62 = arith.constant 0.000000e+00 : f32
    %278 = vector.broadcast %cst_62 : f32 to vector<8x32xf32>
    %279 = arith.maximumf %277, %278 : vector<8x32xf32>
    %280 = arith.truncf %279 : vector<8x32xf32> to vector<8x32xbf16>
    %c256 = arith.constant 256 : index
    %c0_63 = arith.constant 0 : index
    %281 = vector.load %arg4[%c256, %c0_63] : memref<384x32xbf16, #tpu.memory_space<vmem>>, vector<32x32xbf16>
    %cst_64 = arith.constant dense<0.000000e+00> : vector<8x32xf32>
    %282 = tpu.matmul %280, %281, %cst_64 {dimension_numbers = #tpu.dot_dimension_numbers<[1], [0], [0], [1], [0, 0, 1, 1], [], []>} : vector<8x32xbf16>, vector<32x32xbf16>, vector<8x32xf32> -> vector<8x32xf32>
    %c0_65 = arith.constant 0 : index
    %c160_66 = arith.constant 160 : index
    %283 = vector.load %arg5[%c0_65, %c160_66] : memref<1x257xf32, #tpu.memory_space<vmem>>, vector<1x32xf32>
    %284 = vector.broadcast %283 : vector<1x32xf32> to vector<8x32xf32>
    %285 = arith.addf %282, %284 : vector<8x32xf32>
    %cst_67 = arith.constant 0.000000e+00 : f32
    %286 = vector.broadcast %cst_67 : f32 to vector<8x32xf32>
    %287 = arith.maximumf %285, %286 : vector<8x32xf32>
    %288 = arith.truncf %287 : vector<8x32xf32> to vector<8x32xbf16>
    %c288 = arith.constant 288 : index
    %c0_68 = arith.constant 0 : index
    %289 = vector.load %arg4[%c288, %c0_68] : memref<384x32xbf16, #tpu.memory_space<vmem>>, vector<32x32xbf16>
    %cst_69 = arith.constant dense<0.000000e+00> : vector<8x32xf32>
    %290 = tpu.matmul %288, %289, %cst_69 {dimension_numbers = #tpu.dot_dimension_numbers<[1], [0], [0], [1], [0, 0, 1, 1], [], []>} : vector<8x32xbf16>, vector<32x32xbf16>, vector<8x32xf32> -> vector<8x32xf32>
    %c0_70 = arith.constant 0 : index
    %c192_71 = arith.constant 192 : index
    %291 = vector.load %arg5[%c0_70, %c192_71] : memref<1x257xf32, #tpu.memory_space<vmem>>, vector<1x32xf32>
    %292 = vector.broadcast %291 : vector<1x32xf32> to vector<8x32xf32>
    %293 = arith.addf %290, %292 : vector<8x32xf32>
    %cst_72 = arith.constant 0.000000e+00 : f32
    %294 = vector.broadcast %cst_72 : f32 to vector<8x32xf32>
    %295 = arith.maximumf %293, %294 : vector<8x32xf32>
    %296 = arith.truncf %295 : vector<8x32xf32> to vector<8x32xbf16>
    %c320 = arith.constant 320 : index
    %c0_73 = arith.constant 0 : index
    %297 = vector.load %arg4[%c320, %c0_73] : memref<384x32xbf16, #tpu.memory_space<vmem>>, vector<32x32xbf16>
    %cst_74 = arith.constant dense<0.000000e+00> : vector<8x32xf32>
    %298 = tpu.matmul %296, %297, %cst_74 {dimension_numbers = #tpu.dot_dimension_numbers<[1], [0], [0], [1], [0, 0, 1, 1], [], []>} : vector<8x32xbf16>, vector<32x32xbf16>, vector<8x32xf32> -> vector<8x32xf32>
    %c0_75 = arith.constant 0 : index
    %c224_76 = arith.constant 224 : index
    %299 = vector.load %arg5[%c0_75, %c224_76] : memref<1x257xf32, #tpu.memory_space<vmem>>, vector<1x32xf32>
    %300 = vector.broadcast %299 : vector<1x32xf32> to vector<8x32xf32>
    %301 = arith.addf %298, %300 : vector<8x32xf32>
    %cst_77 = arith.constant 0.000000e+00 : f32
    %302 = vector.broadcast %cst_77 : f32 to vector<8x32xf32>
    %303 = arith.maximumf %301, %302 : vector<8x32xf32>
    %304 = arith.truncf %303 : vector<8x32xf32> to vector<8x32xbf16>
    %c352 = arith.constant 352 : index
    %c0_78 = arith.constant 0 : index
    %305 = vector.load %arg4[%c352, %c0_78] : memref<384x32xbf16, #tpu.memory_space<vmem>>, vector<32x32xbf16>
    %cst_79 = arith.constant dense<0.000000e+00> : vector<8x32xf32>
    %306 = tpu.matmul %304, %305, %cst_79 {dimension_numbers = #tpu.dot_dimension_numbers<[1], [0], [0], [1], [0, 0, 1, 1], [], []>} : vector<8x32xbf16>, vector<32x32xbf16>, vector<8x32xf32> -> vector<8x32xf32>
    %307 = vector.extract_strided_slice %306 {offsets = [0, 0], sizes = [8, 1], strides = [1, 1]} : vector<8x32xf32> to vector<8x1xf32>
    %c0_80 = arith.constant 0 : index
    %c256_81 = arith.constant 256 : index
    %308 = vector.load %arg5[%c0_80, %c256_81] : memref<1x257xf32, #tpu.memory_space<vmem>>, vector<1x1xf32>
    %309 = vector.broadcast %308 : vector<1x1xf32> to vector<8x1xf32>
    %310 = arith.addf %307, %309 : vector<8x1xf32>
    %c0_82 = arith.constant 0 : index
    %c0_83 = arith.constant 0 : index
    %311 = vector.load %arg6[%c0_82, %c0_83] : memref<8x1xf32, #tpu.memory_space<vmem>>, vector<8x1xf32>
    tpu.vector_store %arg6[%c0_82, %c0_83], %310 {strides = array<i32>} : memref<8x1xf32, #tpu.memory_space<vmem>>, vector<8x1xf32>,
    return
  }
  func.func @transform_0(%arg0: i32) -> (i32, i32, i32) {
    %c0_i32 = arith.constant 0 : i32
    %c0_i32_0 = arith.constant 0 : i32
    %c0_i32_1 = arith.constant 0 : i32
    return %c0_i32, %arg0, %c0_i32_0 : i32, i32, i32
  }
  func.func @transform_1(%arg0: i32) -> (i32, i32) {
    %c0_i32 = arith.constant 0 : i32
    %c0_i32_0 = arith.constant 0 : i32
    %c0_i32_1 = arith.constant 0 : i32
    return %c0_i32, %c0_i32_0 : i32, i32
  }
  func.func @transform_2(%arg0: i32) -> (i32, i32) {
    %c0_i32 = arith.constant 0 : i32
    %c0_i32_0 = arith.constant 0 : i32
    %c0_i32_1 = arith.constant 0 : i32
    return %c0_i32, %c0_i32_0 : i32, i32
  }
  func.func @transform_3(%arg0: i32) -> (i32, i32) {
    %c0_i32 = arith.constant 0 : i32
    %c0_i32_0 = arith.constant 0 : i32
    %c0_i32_1 = arith.constant 0 : i32
    return %c0_i32, %c0_i32_0 : i32, i32
  }
  func.func @transform_4(%arg0: i32) -> (i32, i32) {
    %c0_i32 = arith.constant 0 : i32
    %c0_i32_0 = arith.constant 0 : i32
    %c0_i32_1 = arith.constant 0 : i32
    return %c0_i32, %c0_i32_0 : i32, i32
  }
  func.func @transform_5(%arg0: i32) -> (i32, i32) {
    %c0_i32 = arith.constant 0 : i32
    %c0_i32_0 = arith.constant 0 : i32
    return %arg0, %c0_i32 : i32, i32
  }
}

</mosaic_0001>

<llo_original>
// kernel: lstm_forecaster_forward.1
$region0: #{lstm_forecaster_forward.1}
  #allocation0 [shape = 'u32[]', space=smem, size = 0x4, offset = 0x4, fixed_abs, tag = 'smem constant byte address 0x4 - core index']
  #allocation1 [shape = 'u32[144,128]{1,0:T(1,128)}', space=vmem, size = 0x12000, scoped, tag = 'internal scratch']
  %s0 = inlined_call_operand.vmem [shape: bf16[8,8,4], index: 0, kind: input, shape index: {}]
  %s1 = inlined_call_operand.vmem [shape: bf16[4,128], index: 1, kind: input, shape index: {}]
  %s2 = inlined_call_operand.vmem [shape: bf16[32,128], index: 2, kind: input, shape index: {}]
  %s3 = inlined_call_operand.vmem [shape: bf16[384,32], index: 3, kind: input, shape index: {}]
  %s4 = inlined_call_operand.vmem [shape: f32[1,257], index: 4, kind: input, shape index: {}]
  %s5 = inlined_call_operand.vmem [shape: f32[8,1], index: 5, kind: output, shape index: {}]
  %s6 = sld [smem:[#allocation0]]
  $region30: #{lstm_forecaster_forward.1} parent=0
    _
  %s8 = ssub.s32 1, %s6
  %s9 = scalar_select 0, %s8, %s6
  // Predicated region
  $region2: #{lstm_forecaster_forward.1} parent=0 // pred_check
    _
  $region3: #{lstm_forecaster_forward.1} parent=0 // pred_check_branch
    %11 = sbr.rel (0) target = $region5
  $region4: #{lstm_forecaster_forward.1} parent=0 // pred_region
    _
  $region5: #{lstm_forecaster_forward.1} parent=0 // pred_fallthru
    _
  // Predicated region
  $region6: #{lstm_forecaster_forward.1} parent=0 // pred_check
    _
  $region7: #{lstm_forecaster_forward.1} parent=0 // pred_check_branch
    %13 = sbr.rel (0) target = $region9
  $region8: #{lstm_forecaster_forward.1} parent=0 // pred_region
    _
  $region9: #{lstm_forecaster_forward.1} parent=0 // pred_fallthru
    _
  // Predicated region
  $region10: #{lstm_forecaster_forward.1} parent=0 // pred_check
    _
  $region11: #{lstm_forecaster_forward.1} parent=0 // pred_check_branch
    %15 = sbr.rel (0) target = $region13
  $region12: #{lstm_forecaster_forward.1} parent=0 // pred_region
    _
  $region13: #{lstm_forecaster_forward.1} parent=0 // pred_fallthru
    _
  // Predicated region
  $region14: #{lstm_forecaster_forward.1} parent=0 // pred_check
    _
  $region15: #{lstm_forecaster_forward.1} parent=0 // pred_check_branch
    %17 = sbr.rel (0) target = $region17
  $region16: #{lstm_forecaster_forward.1} parent=0 // pred_region
    _
  $region17: #{lstm_forecaster_forward.1} parent=0 // pred_fallthru
    _
  // Predicated region
  $region18: #{lstm_forecaster_forward.1} parent=0 // pred_check
    _
  $region19: #{lstm_forecaster_forward.1} parent=0 // pred_check_branch
    %19 = sbr.rel (0) target = $region21
  $region20: #{lstm_forecaster_forward.1} parent=0 // pred_region
    _
  $region21: #{lstm_forecaster_forward.1} parent=0 // pred_fallthru
    _
  %v21 = vld [vmem:[%s2] sm:$0xf]
  %v22 = vld [vmem:[%s2 + $0x4] sm:$0xf]
  %v23 = vld [vmem:[%s2 + $0x8] sm:$0xf]
  %v24 = vld [vmem:[%s2 + $0xc] sm:$0xf]
  %v25 = vld [vmem:[%s0] sm:$0xf]
  %v26 = vld [vmem:[%s0 + $0x4] sm:$0xf]
  %v27 = vld [vmem:[%s0 + $0x8] sm:$0xf]
  %v28 = vld [vmem:[%s0 + $0xc] sm:$0xf]
  %v29 = vld [vmem:[%s0 + $0x10] sm:$0xf]
  %v30 = vld [vmem:[%s0 + $0x14] sm:$0xf]
  %v31 = vld [vmem:[%s0 + $0x18] sm:$0xf]
  %v32 = vld [vmem:[%s0 + $0x1c] sm:$0xf]
  %v33 = vld [vmem:[%s1] sm:$0x3]
  %v34 = vld [vmem:[%s4] sm:$0x1]
  %v36 = vlaneseq
  %v37 = vshrl.u32 %v36, 7
  %v38 = vsub.s32 0, %v37
  %v39 = vrot.slane %v34, %v38
  %v49 = vunpack.c.l.b16 %v25
  %v50 = vunpack.c.l.b16 %v26
  %v51 = vunpack.c.l.b16 %v27
  %v52 = vunpack.c.l.b16 %v28
  %v53 = vunpack.c.l.b16 %v29
  %v54 = vunpack.c.l.b16 %v30
  %v55 = vunpack.c.l.b16 %v31
  %v56 = vunpack.c.l.b16 %v32
  %v57 = vpack.c.b16 %v50, %v49
  %v58 = vpack.c.b16 %v52, %v51
  %v59 = vpack.c.b16 %v54, %v53
  %v60 = vpack.c.b16 %v56, %v55
  %vm61 = vcmask 31744
  %v63 = vsel %vm61, %v57, 0
  %v66 = vsel %vm61, %v58, 0
  %v69 = vsel %vm61, %v59, 0
  %v72 = vsel %vm61, %v60, 0
  %vm74 = vcmask 1041408
  %v76 = vsel %vm74, %v33, 0
  %78 = vmatprep.subr.bf16.mxu0 0
  %79 = vmatpush1.bf16.msra.mxu0 %v76
  %80 = vmatprep.subr.bf16.mxu0 0
  %81 = vmatpush1.bf16.msra.mxu0 0
  %82 = vmatprep.subr.bf16.mxu0 0
  %83 = vmatpush1.bf16.msra.mxu0 0
  %84 = vmatprep.subr.bf16.mxu0 0
  %85 = vmatpush1.bf16.msra.mxu0 0
  %86 = vmatprep.subr.bf16.mxu0 0
  %87 = vmatpush1.bf16.msra.mxu0 0
  %88 = vmatprep.subr.bf16.mxu0 0
  %89 = vmatpush1.bf16.msra.mxu0 0
  %90 = vmatprep.subr.bf16.mxu0 0
  %91 = vmatpush1.bf16.msra.mxu0 0
  %92 = vmatprep.subr.bf16.mxu0 0
  %93 = vmatpush1.bf16.msra.mxu0 0
  %94 = vmatprep.subr.bf16.mxu0 0
  %95 = vmatpush1.bf16.msra.mxu0 0
  %96 = vmatprep.subr.bf16.mxu0 0
  %97 = vmatpush1.bf16.msra.mxu0 0
  %98 = vmatprep.subr.bf16.mxu0 0
  %99 = vmatpush1.bf16.msra.mxu0 0
  %100 = vmatprep.subr.bf16.mxu0 0
  %101 = vmatpush1.bf16.msra.mxu0 0
  %102 = vmatprep.subr.bf16.mxu0 0
  %103 = vmatpush1.bf16.msra.mxu0 0
  %104 = vmatprep.subr.bf16.mxu0 0
  %105 = vmatpush1.bf16.msra.mxu0 0
  %106 = vmatprep.subr.bf16.mxu0 0
  %107 = vmatpush1.bf16.msra.mxu0 0
  %108 = vmatprep.subr.bf16.mxu0 0
  %109 = vmatpush1.bf16.msra.mxu0 0
  %110 = vmatprep.mubr.bf16.mxu0 0
  %111 = vmatmul.mubr.bf16.gmra.mrb[0].mxu0 %v63
  %v112 = vpop.f32.mrb[0].mxu0
  %v113 = vadd.f32 %v39, %v112
  %v114 = vpop.f32.mrb[0].mxu0
  %v115 = vpop.f32.mrb[0].mxu0
  %v116 = vadd.f32 %v39, %v115
  %v117 = vpop.f32.mrb[0].mxu0
  %118 = vmatprep.mubr.bf16.mxu0 0
  %119 = vmatmul.mubr.bf16.gmra.mrb[0].mxu0 %v66
  %v120 = vpop.f32.mrb[0].mxu0
  %v121 = vadd.f32 %v39, %v120
  %v122 = vpop.f32.mrb[0].mxu0
  %v123 = vpop.f32.mrb[0].mxu0
  %v124 = vadd.f32 %v39, %v123
  %v125 = vpop.f32.mrb[0].mxu0
  %126 = vmatprep.mubr.bf16.mxu0 0
  %127 = vmatmul.mubr.bf16.gmra.mrb[0].mxu0 %v69
  %v128 = vpop.f32.mrb[0].mxu0
  %v129 = vadd.f32 %v39, %v128
  %v130 = vpop.f32.mrb[0].mxu0
  %v131 = vpop.f32.mrb[0].mxu0
  %v132 = vadd.f32 %v39, %v131
  %v133 = vpop.f32.mrb[0].mxu0
  %134 = vmatprep.mubr.bf16.mxu0 0
  %135 = vmatmul.mubr.bf16.gmra.mrb[0].mxu0 %v72
  %v136 = vpop.f32.mrb[0].mxu0
  %v137 = vadd.f32 %v39, %v136
  %v138 = vpop.f32.mrb[0].mxu0
  %v139 = vpop.f32.mrb[0].mxu0
  %v140 = vadd.f32 %v39, %v139
  %v141 = vpop.f32.mrb[0].mxu0
  %142 = vdwg.mxu0
  %v147 = vunpack.c.l.b16 %v21
  %v148 = vunpack.c.l.b16 %v22
  %v149 = vunpack.c.l.b16 %v23
  %v150 = vunpack.c.l.b16 %v24
  %v151 = vpack.c.b16 %v148, %v147
  %v152 = vpack.c.b16 %v150, %v149
  %vm155 = vcmask 261120
  %v157 = vsel %vm155, 0, 0
  %159 = vmatprep.subr.bf16.mxu0 0
  %160 = vmatpush1.bf16.msra.mxu0 %v151
  %161 = vmatprep.subr.bf16.mxu0 0
  %162 = vmatpush1.bf16.msra.mxu0 %v152
  %163 = vmatprep.subr.bf16.mxu0 0
  %164 = vmatpush1.bf16.msra.mxu0 0
  %165 = vmatprep.subr.bf16.mxu0 0
  %166 = vmatpush1.bf16.msra.mxu0 0
  %167 = vmatprep.subr.bf16.mxu0 0
  %168 = vmatpush1.bf16.msra.mxu0 0
  %169 = vmatprep.subr.bf16.mxu0 0
  %170 = vmatpush1.bf16.msra.mxu0 0
  %171 = vmatprep.subr.bf16.mxu0 0
  %172 = vmatpush1.bf16.msra.mxu0 0
  %173 = vmatprep.subr.bf16.mxu0 0
  %174 = vmatpush1.bf16.msra.mxu0 0
  %175 = vmatprep.subr.bf16.mxu0 0
  %176 = vmatpush1.bf16.msra.mxu0 0
  %177 = vmatprep.subr.bf16.mxu0 0
  %178 = vmatpush1.bf16.msra.mxu0 0
  %179 = vmatprep.subr.bf16.mxu0 0
  %180 = vmatpush1.bf16.msra.mxu0 0
  %181 = vmatprep.subr.bf16.mxu0 0
  %182 = vmatpush1.bf16.msra.mxu0 0
  %183 = vmatprep.subr.bf16.mxu0 0
  %184 = vmatpush1.bf16.msra.mxu0 0
  %185 = vmatprep.subr.bf16.mxu0 0
  %186 = vmatpush1.bf16.msra.mxu0 0
  %187 = vmatprep.subr.bf16.mxu0 0
  %188 = vmatpush1.bf16.msra.mxu0 0
  %189 = vmatprep.subr.bf16.mxu0 0
  %190 = vmatpush1.bf16.msra.mxu0 0
  %191 = vmatprep.mubr.bf16.mxu0 0
  %192 = vmatmul.mubr.bf16.gmra.mrb[0].mxu0 %v157
  %v193 = vpop.f32.mrb[0].mxu0
  %v194 = vadd.f32 0.0, %v193
  %v195 = vpop.f32.mrb[0].mxu0
  %v196 = vpop.f32.mrb[0].mxu0
  %v197 = vpop.f32.mrb[0].mxu0
  %198 = vdwg.mxu0
  %v199 = vadd.f32 %v113, %v194
  %v200 = vxor.u32 %v199, 2147483648
  %v201 = vmul.f32 %v200, 1.442695
  %v202 = vpow.pop %v201
  %v203 = vadd.f32 %v202, 1.0
  %v204 = vrcp.pop %v203
  %v205 = vmul.f32 1.0, %v204
  %v206 = vtanh.pop %v199
  %v207 = vmul.f32 %v205, 0.0
  %209 = vrot.lane.b32.xlu0 %v206, 64
  %v210 = vpop.permute.xlu0 %209
  %v212 = vmul.f32 %v205, %v210
  %214 = vrot.lane.b32.xlu0 %v212, 32
  %v215 = vpop.permute.xlu0 %214
  %v217 = vadd.f32 %v207, %v215
  %v218 = vtanh.pop %v217
  %220 = vrot.lane.b32.xlu0 %v218, 64
  %v221 = vpop.permute.xlu0 %220
  %v223 = vmul.f32 %v205, %v221
  %v224 = vpack.c.bf16 %v223, %v223
  %v225 = vld [vmem:[%s3] sm:$0xf]
  %v226 = vld [vmem:[%s3 + $0x4] sm:$0xf]
  %v227 = vld [vmem:[%s3 + $0x8] sm:$0xf]
  %v228 = vld [vmem:[%s3 + $0xc] sm:$0xf]
  %230 = vrot.lane.b32.xlu0 %v224, 32
  %v231 = vpop.permute.xlu0 %230
  %v233 = vsel %vm155, %v231, 0
  %235 = vmatprep.subr.bf16.mxu0 0
  %236 = vmatpush1.bf16.msra.mxu0 %v151
  %237 = vmatprep.subr.bf16.mxu0 0
  %238 = vmatpush1.bf16.msra.mxu0 %v152
  %239 = vmatprep.subr.bf16.mxu0 0
  %240 = vmatpush1.bf16.msra.mxu0 0
  %241 = vmatprep.subr.bf16.mxu0 0
  %242 = vmatpush1.bf16.msra.mxu0 0
  %243 = vmatprep.subr.bf16.mxu0 0
  %244 = vmatpush1.bf16.msra.mxu0 0
  %245 = vmatprep.subr.bf16.mxu0 0
  %246 = vmatpush1.bf16.msra.mxu0 0
  %247 = vmatprep.subr.bf16.mxu0 0
  %248 = vmatpush1.bf16.msra.mxu0 0
  %249 = vmatprep.subr.bf16.mxu0 0
  %250 = vmatpush1.bf16.msra.mxu0 0
  %251 = vmatprep.subr.bf16.mxu0 0
  %252 = vmatpush1.bf16.msra.mxu0 0
  %253 = vmatprep.subr.bf16.mxu0 0
  %254 = vmatpush1.bf16.msra.mxu0 0
  %255 = vmatprep.subr.bf16.mxu0 0
  %256 = vmatpush1.bf16.msra.mxu0 0
  %257 = vmatprep.subr.bf16.mxu0 0
  %258 = vmatpush1.bf16.msra.mxu0 0
  %259 = vmatprep.subr.bf16.mxu0 0
  %260 = vmatpush1.bf16.msra.mxu0 0
  %261 = vmatprep.subr.bf16.mxu0 0
  %262 = vmatpush1.bf16.msra.mxu0 0
  %263 = vmatprep.subr.bf16.mxu0 0
  %264 = vmatpush1.bf16.msra.mxu0 0
  %265 = vmatprep.subr.bf16.mxu0 0
  %266 = vmatpush1.bf16.msra.mxu0 0
  %267 = vmatprep.mubr.bf16.mxu0 0
  %268 = vmatmul.mubr.bf16.gmra.mrb[0].mxu0 %v233
  %v269 = vpop.f32.mrb[0].mxu0
  %v270 = vadd.f32 0.0, %v269
  %v271 = vpop.f32.mrb[0].mxu0
  %v272 = vpop.f32.mrb[0].mxu0
  %v273 = vpop.f32.mrb[0].mxu0
  %274 = vdwg.mxu0
  %v275 = vadd.f32 %v116, %v270
  %v276 = vxor.u32 %v275, 2147483648
  %v277 = vmul.f32 %v276, 1.442695
  %v278 = vpow.pop %v277
  %v279 = vadd.f32 %v278, 1.0
  %v280 = vrcp.pop %v279
  %v281 = vmul.f32 1.0, %v280
  %v282 = vtanh.pop %v275
  %v283 = vmul.f32 %v281, %v217
  %285 = vrot.lane.b32.xlu0 %v282, 64
  %v286 = vpop.permute.xlu0 %285
  %v288 = vmul.f32 %v281, %v286
  %290 = vrot.lane.b32.xlu0 %v288, 32
  %v291 = vpop.permute.xlu0 %290
  %v293 = vadd.f32 %v283, %v291
  %v294 = vtanh.pop %v293
  %296 = vrot.lane.b32.xlu0 %v294, 64
  %v297 = vpop.permute.xlu0 %296
  %v299 = vmul.f32 %v281, %v297
  %v300 = vpack.c.bf16 %v299, %v299
  %v301 = vld [vmem:[%s3 + $0x10] sm:$0xf]
  %v302 = vld [vmem:[%s3 + $0x14] sm:$0xf]
  %v303 = vld [vmem:[%s3 + $0x18] sm:$0xf]
  %v304 = vld [vmem:[%s3 + $0x1c] sm:$0xf]
  %306 = vrot.lane.b32.xlu0 %v300, 32
  %v307 = vpop.permute.xlu0 %306
  %v312 = vunpack.c.l.b16 %v301
  %v313 = vunpack.c.l.b16 %v302
  %v314 = vunpack.c.l.b16 %v303
  %v315 = vunpack.c.l.b16 %v304
  %v316 = vpack.c.b16 %v313, %v312
  %v317 = vpack.c.b16 %v315, %v314
  %v321 = vsel %vm155, %v307, 0
  %323 = vmatprep.subr.bf16.mxu0 0
  %324 = vmatpush1.bf16.msra.mxu0 %v316
  %325 = vmatprep.subr.bf16.mxu0 0
  %326 = vmatpush1.bf16.msra.mxu0 %v317
  %327 = vmatprep.subr.bf16.mxu0 0
  %328 = vmatpush1.bf16.msra.mxu0 0
  %329 = vmatprep.subr.bf16.mxu0 0
  %330 = vmatpush1.bf16.msra.mxu0 0
  %331 = vmatprep.subr.bf16.mxu0 0
  %332 = vmatpush1.bf16.msra.mxu0 0
  %333 = vmatprep.subr.bf16.mxu0 0
  %334 = vmatpush1.bf16.msra.mxu0 0
  %335 = vmatprep.subr.bf16.mxu0 0
  %336 = vmatpush1.bf16.msra.mxu0 0
  %337 = vmatprep.subr.bf16.mxu0 0
  %338 = vmatpush1.bf16.msra.mxu0 0
  %339 = vmatprep.subr.bf16.mxu0 0
  %340 = vmatpush1.bf16.msra.mxu0 0
  %341 = vmatprep.subr.bf16.mxu0 0
  %342 = vmatpush1.bf16.msra.mxu0 0
  %343 = vmatprep.subr.bf16.mxu0 0
  %344 = vmatpush1.bf16.msra.mxu0 0
  %345 = vmatprep.subr.bf16.mxu0 0
  %346 = vmatpush1.bf16.msra.mxu0 0
  %347 = vmatprep.subr.bf16.mxu0 0
  %348 = vmatpush1.bf16.msra.mxu0 0
  %349 = vmatprep.subr.bf16.mxu0 0
  %350 = vmatpush1.bf16.msra.mxu0 0
  %351 = vmatprep.subr.bf16.mxu0 0
  %352 = vmatpush1.bf16.msra.mxu0 0
  %353 = vmatprep.subr.bf16.mxu0 0
  %354 = vmatpush1.bf16.msra.mxu0 0
  %355 = vmatprep.mubr.bf16.mxu0 0
  %356 = vmatmul.mubr.bf16.gmra.mrb[0].mxu0 %v321
  %v357 = vpop.f32.mrb[0].mxu0
  %v358 = vadd.f32 0.0, %v357
  %v359 = vpop.f32.mrb[0].mxu0
  %v360 = vpop.f32.mrb[0].mxu0
  %v361 = vpop.f32.mrb[0].mxu0
  %362 = vdwg.mxu0
  %v367 = vunpack.c.l.b16 %v225
  %v368 = vunpack.c.l.b16 %v226
  %v369 = vunpack.c.l.b16 %v227
  %v370 = vunpack.c.l.b16 %v228
  %v371 = vpack.c.b16 %v368, %v367
  %v372 = vpack.c.b16 %v370, %v369
  %375 = vmatprep.subr.bf16.mxu0 0
  %376 = vmatpush1.bf16.msra.mxu0 %v371
  %377 = vmatprep.subr.bf16.mxu0 0
  %378 = vmatpush1.bf16.msra.mxu0 %v372
  %379 = vmatprep.subr.bf16.mxu0 0
  %380 = vmatpush1.bf16.msra.mxu0 0
  %381 = vmatprep.subr.bf16.mxu0 0
  %382 = vmatpush1.bf16.msra.mxu0 0
  %383 = vmatprep.subr.bf16.mxu0 0
  %384 = vmatpush1.bf16.msra.mxu0 0
  %385 = vmatprep.subr.bf16.mxu0 0
  %386 = vmatpush1.bf16.msra.mxu0 0
  %387 = vmatprep.subr.bf16.mxu0 0
  %388 = vmatpush1.bf16.msra.mxu0 0
  %389 = vmatprep.subr.bf16.mxu0 0
  %390 = vmatpush1.bf16.msra.mxu0 0
  %391 = vmatprep.subr.bf16.mxu0 0
  %392 = vmatpush1.bf16.msra.mxu0 0
  %393 = vmatprep.subr.bf16.mxu0 0
  %394 = vmatpush1.bf16.msra.mxu0 0
  %395 = vmatprep.subr.bf16.mxu0 0
  %396 = vmatpush1.bf16.msra.mxu0 0
  %397 = vmatprep.subr.bf16.mxu0 0
  %398 = vmatpush1.bf16.msra.mxu0 0
  %399 = vmatprep.subr.bf16.mxu0 0
  %400 = vmatpush1.bf16.msra.mxu0 0
  %401 = vmatprep.subr.bf16.mxu0 0
  %402 = vmatpush1.bf16.msra.mxu0 0
  %403 = vmatprep.subr.bf16.mxu0 0
  %404 = vmatpush1.bf16.msra.mxu0 0
  %405 = vmatprep.subr.bf16.mxu0 0
  %406 = vmatpush1.bf16.msra.mxu0 0
  %407 = vmatprep.mubr.bf16.mxu0 0
  %408 = vmatmul.mubr.bf16.gmra.mrb[0].mxu0 %v233
  %v409 = vpop.f32.mrb[0].mxu0
  %v410 = vadd.f32 %v358, %v409
  %v411 = vpop.f32.mrb[0].mxu0
  %v412 = vpop.f32.mrb[0].mxu0
  %v413 = vpop.f32.mrb[0].mxu0
  %414 = vdwg.mxu0
  %415 = vmatprep.subr.bf16.mxu0 0
  %416 = vmatpush1.bf16.msra.mxu0 %v151
  %417 = vmatprep.subr.bf16.mxu0 0
  %418 = vmatpush1.bf16.msra.mxu0 %v152
  %419 = vmatprep.subr.bf16.mxu0 0
  %420 = vmatpush1.bf16.msra.mxu0 0
  %421 = vmatprep.subr.bf16.mxu0 0
  %422 = vmatpush1.bf16.msra.mxu0 0
  %423 = vmatprep.subr.bf16.mxu0 0
  %424 = vmatpush1.bf16.msra.mxu0 0
  %425 = vmatprep.subr.bf16.mxu0 0
  %426 = vmatpush1.bf16.msra.mxu0 0
  %427 = vmatprep.subr.bf16.mxu0 0
  %428 = vmatpush1.bf16.msra.mxu0 0
  %429 = vmatprep.subr.bf16.mxu0 0
  %430 = vmatpush1.bf16.msra.mxu0 0
  %431 = vmatprep.subr.bf16.mxu0 0
  %432 = vmatpush1.bf16.msra.mxu0 0
  %433 = vmatprep.subr.bf16.mxu0 0
  %434 = vmatpush1.bf16.msra.mxu0 0
  %435 = vmatprep.subr.bf16.mxu0 0
  %436 = vmatpush1.bf16.msra.mxu0 0
  %437 = vmatprep.subr.bf16.mxu0 0
  %438 = vmatpush1.bf16.msra.mxu0 0
  %439 = vmatprep.subr.bf16.mxu0 0
  %440 = vmatpush1.bf16.msra.mxu0 0
  %441 = vmatprep.subr.bf16.mxu0 0
  %442 = vmatpush1.bf16.msra.mxu0 0
  %443 = vmatprep.subr.bf16.mxu0 0
  %444 = vmatpush1.bf16.msra.mxu0 0
  %445 = vmatprep.subr.bf16.mxu0 0
  %446 = vmatpush1.bf16.msra.mxu0 0
  %447 = vmatprep.mubr.bf16.mxu0 0
  %448 = vmatmul.mubr.bf16.gmra.mrb[0].mxu0 %v321
  %v449 = vpop.f32.mrb[0].mxu0
  %v450 = vadd.f32 0.0, %v449
  %v451 = vpop.f32.mrb[0].mxu0
  %v452 = vpop.f32.mrb[0].mxu0
  %v453 = vpop.f32.mrb[0].mxu0
  %454 = vdwg.mxu0
  %v455 = vadd.f32 %v121, %v450
  %v456 = vxor.u32 %v455, 2147483648
  %v457 = vmul.f32 %v456, 1.442695
  %v458 = vpow.pop %v457
  %v459 = vadd.f32 %v458, 1.0
  %v460 = vrcp.pop %v459
  %v461 = vmul.f32 1.0, %v460
  %v462 = vtanh.pop %v455
  %v463 = vmul.f32 %v461, %v293
  %465 = vrot.lane.b32.xlu0 %v462, 64
  %v466 = vpop.permute.xlu0 %465
  %v468 = vmul.f32 %v461, %v466
  %470 = vrot.lane.b32.xlu0 %v468, 32
  %v471 = vpop.permute.xlu0 %470
  %v473 = vadd.f32 %v463, %v471
  %v474 = vtanh.pop %v473
  %476 = vrot.lane.b32.xlu0 %v474, 64
  %v477 = vpop.permute.xlu0 %476
  %v479 = vmul.f32 %v461, %v477
  %v480 = vpack.c.bf16 %v479, %v479
  %v481 = vld [vmem:[%s3 + $0x20] sm:$0xf]
  %v482 = vld [vmem:[%s3 + $0x24] sm:$0xf]
  %v483 = vld [vmem:[%s3 + $0x28] sm:$0xf]
  %v484 = vld [vmem:[%s3 + $0x2c] sm:$0xf]
  %486 = vrot.lane.b32.xlu0 %v480, 32
  %v487 = vpop.permute.xlu0 %486
  %v492 = vunpack.c.l.b16 %v481
  %v493 = vunpack.c.l.b16 %v482
  %v494 = vunpack.c.l.b16 %v483
  %v495 = vunpack.c.l.b16 %v484
  %v496 = vpack.c.b16 %v493, %v492
  %v497 = vpack.c.b16 %v495, %v494
  %v501 = vsel %vm155, %v487, 0
  %503 = vmatprep.subr.bf16.mxu0 0
  %504 = vmatpush1.bf16.msra.mxu0 %v496
  %505 = vmatprep.subr.bf16.mxu0 0
  %506 = vmatpush1.bf16.msra.mxu0 %v497
  %507 = vmatprep.subr.bf16.mxu0 0
  %508 = vmatpush1.bf16.msra.mxu0 0
  %509 = vmatprep.subr.bf16.mxu0 0
  %510 = vmatpush1.bf16.msra.mxu0 0
  %511 = vmatprep.subr.bf16.mxu0 0
  %512 = vmatpush1.bf16.msra.mxu0 0
  %513 = vmatprep.subr.bf16.mxu0 0
  %514 = vmatpush1.bf16.msra.mxu0 0
  %515 = vmatprep.subr.bf16.mxu0 0
  %516 = vmatpush1.bf16.msra.mxu0 0
  %517 = vmatprep.subr.bf16.mxu0 0
  %518 = vmatpush1.bf16.msra.mxu0 0
  %519 = vmatprep.subr.bf16.mxu0 0
  %520 = vmatpush1.bf16.msra.mxu0 0
  %521 = vmatprep.subr.bf16.mxu0 0
  %522 = vmatpush1.bf16.msra.mxu0 0
  %523 = vmatprep.subr.bf16.mxu0 0
  %524 = vmatpush1.bf16.msra.mxu0 0
  %525 = vmatprep.subr.bf16.mxu0 0
  %526 = vmatpush1.bf16.msra.mxu0 0
  %527 = vmatprep.subr.bf16.mxu0 0
  %528 = vmatpush1.bf16.msra.mxu0 0
  %529 = vmatprep.subr.bf16.mxu0 0
  %530 = vmatpush1.bf16.msra.mxu0 0
  %531 = vmatprep.subr.bf16.mxu0 0
  %532 = vmatpush1.bf16.msra.mxu0 0
  %533 = vmatprep.subr.bf16.mxu0 0
  %534 = vmatpush1.bf16.msra.mxu0 0
  %535 = vmatprep.mubr.bf16.mxu0 0
  %536 = vmatmul.mubr.bf16.gmra.mrb[0].mxu0 %v501
  %v537 = vpop.f32.mrb[0].mxu0
  %v538 = vadd.f32 0.0, %v537
  %v539 = vpop.f32.mrb[0].mxu0
  %v540 = vpop.f32.mrb[0].mxu0
  %v541 = vpop.f32.mrb[0].mxu0
  %542 = vdwg.mxu0
  %v543 = vadd.f32 %v410, %v538
  %544 = vmatprep.subr.bf16.mxu0 0
  %545 = vmatpush1.bf16.msra.mxu0 %v151
  %546 = vmatprep.subr.bf16.mxu0 0
  %547 = vmatpush1.bf16.msra.mxu0 %v152
  %548 = vmatprep.subr.bf16.mxu0 0
  %549 = vmatpush1.bf16.msra.mxu0 0
  %550 = vmatprep.subr.bf16.mxu0 0
  %551 = vmatpush1.bf16.msra.mxu0 0
  %552 = vmatprep.subr.bf16.mxu0 0
  %553 = vmatpush1.bf16.msra.mxu0 0
  %554 = vmatprep.subr.bf16.mxu0 0
  %555 = vmatpush1.bf16.msra.mxu0 0
  %556 = vmatprep.subr.bf16.mxu0 0
  %557 = vmatpush1.bf16.msra.mxu0 0
  %558 = vmatprep.subr.bf16.mxu0 0
  %559 = vmatpush1.bf16.msra.mxu0 0
  %560 = vmatprep.subr.bf16.mxu0 0
  %561 = vmatpush1.bf16.msra.mxu0 0
  %562 = vmatprep.subr.bf16.mxu0 0
  %563 = vmatpush1.bf16.msra.mxu0 0
  %564 = vmatprep.subr.bf16.mxu0 0
  %565 = vmatpush1.bf16.msra.mxu0 0
  %566 = vmatprep.subr.bf16.mxu0 0
  %567 = vmatpush1.bf16.msra.mxu0 0
  %568 = vmatprep.subr.bf16.mxu0 0
  %569 = vmatpush1.bf16.msra.mxu0 0
  %570 = vmatprep.subr.bf16.mxu0 0
  %571 = vmatpush1.bf16.msra.mxu0 0
  %572 = vmatprep.subr.bf16.mxu0 0
  %573 = vmatpush1.bf16.msra.mxu0 0
  %574 = vmatprep.subr.bf16.mxu0 0
  %575 = vmatpush1.bf16.msra.mxu0 0
  %576 = vmatprep.mubr.bf16.mxu0 0
  %577 = vmatmul.mubr.bf16.gmra.mrb[0].mxu0 %v501
  %v578 = vpop.f32.mrb[0].mxu0
  %v579 = vadd.f32 0.0, %v578
  %v580 = vpop.f32.mrb[0].mxu0
  %v581 = vpop.f32.mrb[0].mxu0
  %v582 = vpop.f32.mrb[0].mxu0
  %583 = vdwg.mxu0
  %v584 = vadd.f32 %v124, %v579
  %v585 = vxor.u32 %v584, 2147483648
  %v586 = vmul.f32 %v585, 1.442695
  %v587 = vpow.pop %v586
  %v588 = vadd.f32 %v587, 1.0
  %v589 = vrcp.pop %v588
  %v590 = vmul.f32 1.0, %v589
  %v591 = vtanh.pop %v584
  %v592 = vmul.f32 %v590, %v473
  %594 = vrot.lane.b32.xlu0 %v591, 64
  %v595 = vpop.permute.xlu0 %594
  %v597 = vmul.f32 %v590, %v595
  %599 = vrot.lane.b32.xlu0 %v597, 32
  %v600 = vpop.permute.xlu0 %599
  %v602 = vadd.f32 %v592, %v600
  %v603 = vtanh.pop %v602
  %605 = vrot.lane.b32.xlu0 %v603, 64
  %v606 = vpop.permute.xlu0 %605
  %v608 = vmul.f32 %v590, %v606
  %v609 = vpack.c.bf16 %v608, %v608
  %v610 = vld [vmem:[%s3 + $0x30] sm:$0xf]
  %v611 = vld [vmem:[%s3 + $0x34] sm:$0xf]
  %v612 = vld [vmem:[%s3 + $0x38] sm:$0xf]
  %v613 = vld [vmem:[%s3 + $0x3c] sm:$0xf]
  %615 = vrot.lane.b32.xlu0 %v609, 32
  %v616 = vpop.permute.xlu0 %615
  %v621 = vunpack.c.l.b16 %v610
  %v622 = vunpack.c.l.b16 %v611
  %v623 = vunpack.c.l.b16 %v612
  %v624 = vunpack.c.l.b16 %v613
  %v625 = vpack.c.b16 %v622, %v621
  %v626 = vpack.c.b16 %v624, %v623
  %v630 = vsel %vm155, %v616, 0
  %632 = vmatprep.subr.bf16.mxu0 0
  %633 = vmatpush1.bf16.msra.mxu0 %v625
  %634 = vmatprep.subr.bf16.mxu0 0
  %635 = vmatpush1.bf16.msra.mxu0 %v626
  %636 = vmatprep.subr.bf16.mxu0 0
  %637 = vmatpush1.bf16.msra.mxu0 0
  %638 = vmatprep.subr.bf16.mxu0 0
  %639 = vmatpush1.bf16.msra.mxu0 0
  %640 = vmatprep.subr.bf16.mxu0 0
  %641 = vmatpush1.bf16.msra.mxu0 0
  %642 = vmatprep.subr.bf16.mxu0 0
  %643 = vmatpush1.bf16.msra.mxu0 0
  %644 = vmatprep.subr.bf16.mxu0 0
  %645 = vmatpush1.bf16.msra.mxu0 0
  %646 = vmatprep.subr.bf16.mxu0 0
  %647 = vmatpush1.bf16.msra.mxu0 0
  %648 = vmatprep.subr.bf16.mxu0 0
  %649 = vmatpush1.bf16.msra.mxu0 0
  %650 = vmatprep.subr.bf16.mxu0 0
  %651 = vmatpush1.bf16.msra.mxu0 0
  %652 = vmatprep.subr.bf16.mxu0 0
  %653 = vmatpush1.bf16.msra.mxu0 0
  %654 = vmatprep.subr.bf16.mxu0 0
  %655 = vmatpush1.bf16.msra.mxu0 0
  %656 = vmatprep.subr.bf16.mxu0 0
  %657 = vmatpush1.bf16.msra.mxu0 0
  %658 = vmatprep.subr.bf16.mxu0 0
  %659 = vmatpush1.bf16.msra.mxu0 0
  %660 = vmatprep.subr.bf16.mxu0 0
  %661 = vmatpush1.bf16.msra.mxu0 0
  %662 = vmatprep.subr.bf16.mxu0 0
  %663 = vmatpush1.bf16.msra.mxu0 0
  %664 = vmatprep.mubr.bf16.mxu0 0
  %665 = vmatmul.mubr.bf16.gmra.mrb[0].mxu0 %v630
  %v666 = vpop.f32.mrb[0].mxu0
  %v667 = vadd.f32 0.0, %v666
  %v668 = vpop.f32.mrb[0].mxu0
  %v669 = vpop.f32.mrb[0].mxu0
  %v670 = vpop.f32.mrb[0].mxu0
  %671 = vdwg.mxu0
  %v672 = vadd.f32 %v543, %v667
  %673 = vmatprep.subr.bf16.mxu0 0
  %674 = vmatpush1.bf16.msra.mxu0 %v151
  %675 = vmatprep.subr.bf16.mxu0 0
  %676 = vmatpush1.bf16.msra.mxu0 %v152
  %677 = vmatprep.subr.bf16.mxu0 0
  %678 = vmatpush1.bf16.msra.mxu0 0
  %679 = vmatprep.subr.bf16.mxu0 0
  %680 = vmatpush1.bf16.msra.mxu0 0
  %681 = vmatprep.subr.bf16.mxu0 0
  %682 = vmatpush1.bf16.msra.mxu0 0
  %683 = vmatprep.subr.bf16.mxu0 0
  %684 = vmatpush1.bf16.msra.mxu0 0
  %685 = vmatprep.subr.bf16.mxu0 0
  %686 = vmatpush1.bf16.msra.mxu0 0
  %687 = vmatprep.subr.bf16.mxu0 0
  %688 = vmatpush1.bf16.msra.mxu0 0
  %689 = vmatprep.subr.bf16.mxu0 0
  %690 = vmatpush1.bf16.msra.mxu0 0
  %691 = vmatprep.subr.bf16.mxu0 0
  %692 = vmatpush1.bf16.msra.mxu0 0
  %693 = vmatprep.subr.bf16.mxu0 0
  %694 = vmatpush1.bf16.msra.mxu0 0
  %695 = vmatprep.subr.bf16.mxu0 0
  %696 = vmatpush1.bf16.msra.mxu0 0
  %697 = vmatprep.subr.bf16.mxu0 0
  %698 = vmatpush1.bf16.msra.mxu0 0
  %699 = vmatprep.subr.bf16.mxu0 0
  %700 = vmatpush1.bf16.msra.mxu0 0
  %701 = vmatprep.subr.bf16.mxu0 0
  %702 = vmatpush1.bf16.msra.mxu0 0
  %703 = vmatprep.subr.bf16.mxu0 0
  %704 = vmatpush1.bf16.msra.mxu0 0
  %705 = vmatprep.mubr.bf16.mxu0 0
  %706 = vmatmul.mubr.bf16.gmra.mrb[0].mxu0 %v630
  %v707 = vpop.f32.mrb[0].mxu0
  %v708 = vadd.f32 0.0, %v707
  %v709 = vpop.f32.mrb[0].mxu0
  %v710 = vpop.f32.mrb[0].mxu0
  %v711 = vpop.f32.mrb[0].mxu0
  %712 = vdwg.mxu0
  %v713 = vadd.f32 %v129, %v708
  %v714 = vxor.u32 %v713, 2147483648
  %v715 = vmul.f32 %v714, 1.442695
  %v716 = vpow.pop %v715
  %v717 = vadd.f32 %v716, 1.0
  %v718 = vrcp.pop %v717
  %v719 = vmul.f32 1.0, %v718
  %v720 = vtanh.pop %v713
  %v721 = vmul.f32 %v719, %v602
  %723 = vrot.lane.b32.xlu0 %v720, 64
  %v724 = vpop.permute.xlu0 %723
  %v726 = vmul.f32 %v719, %v724
  %728 = vrot.lane.b32.xlu0 %v726, 32
  %v729 = vpop.permute.xlu0 %728
  %v731 = vadd.f32 %v721, %v729
  %v732 = vtanh.pop %v731
  %734 = vrot.lane.b32.xlu0 %v732, 64
  %v735 = vpop.permute.xlu0 %734
  %v737 = vmul.f32 %v719, %v735
  %v738 = vpack.c.bf16 %v737, %v737
  %v739 = vld [vmem:[%s3 + $0x40] sm:$0xf]
  %v740 = vld [vmem:[%s3 + $0x44] sm:$0xf]
  %v741 = vld [vmem:[%s3 + $0x48] sm:$0xf]
  %v742 = vld [vmem:[%s3 + $0x4c] sm:$0xf]
  %744 = vrot.lane.b32.xlu0 %v738, 32
  %v745 = vpop.permute.xlu0 %744
  %v750 = vunpack.c.l.b16 %v739
  %v751 = vunpack.c.l.b16 %v740
  %v752 = vunpack.c.l.b16 %v741
  %v753 = vunpack.c.l.b16 %v742
  %v754 = vpack.c.b16 %v751, %v750
  %v755 = vpack.c.b16 %v753, %v752
  %v759 = vsel %vm155, %v745, 0
  %761 = vmatprep.subr.bf16.mxu0 0
  %762 = vmatpush1.bf16.msra.mxu0 %v754
  %763 = vmatprep.subr.bf16.mxu0 0
  %764 = vmatpush1.bf16.msra.mxu0 %v755
  %765 = vmatprep.subr.bf16.mxu0 0
  %766 = vmatpush1.bf16.msra.mxu0 0
  %767 = vmatprep.subr.bf16.mxu0 0
  %768 = vmatpush1.bf16.msra.mxu0 0
  %769 = vmatprep.subr.bf16.mxu0 0
  %770 = vmatpush1.bf16.msra.mxu0 0
  %771 = vmatprep.subr.bf16.mxu0 0
  %772 = vmatpush1.bf16.msra.mxu0 0
  %773 = vmatprep.subr.bf16.mxu0 0
  %774 = vmatpush1.bf16.msra.mxu0 0
  %775 = vmatprep.subr.bf16.mxu0 0
  %776 = vmatpush1.bf16.msra.mxu0 0
  %777 = vmatprep.subr.bf16.mxu0 0
  %778 = vmatpush1.bf16.msra.mxu0 0
  %779 = vmatprep.subr.bf16.mxu0 0
  %780 = vmatpush1.bf16.msra.mxu0 0
  %781 = vmatprep.subr.bf16.mxu0 0
  %782 = vmatpush1.bf16.msra.mxu0 0
  %783 = vmatprep.subr.bf16.mxu0 0
  %784 = vmatpush1.bf16.msra.mxu0 0
  %785 = vmatprep.subr.bf16.mxu0 0
  %786 = vmatpush1.bf16.msra.mxu0 0
  %787 = vmatprep.subr.bf16.mxu0 0
  %788 = vmatpush1.bf16.msra.mxu0 0
  %789 = vmatprep.subr.bf16.mxu0 0
  %790 = vmatpush1.bf16.msra.mxu0 0
  %791 = vmatprep.subr.bf16.mxu0 0
  %792 = vmatpush1.bf16.msra.mxu0 0
  %793 = vmatprep.mubr.bf16.mxu0 0
  %794 = vmatmul.mubr.bf16.gmra.mrb[0].mxu0 %v759
  %v795 = vpop.f32.mrb[0].mxu0
  %v796 = vadd.f32 0.0, %v795
  %v797 = vpop.f32.mrb[0].mxu0
  %v798 = vpop.f32.mrb[0].mxu0
  %v799 = vpop.f32.mrb[0].mxu0
  %800 = vdwg.mxu0
  %v801 = vadd.f32 %v672, %v796
  %802 = vmatprep.subr.bf16.mxu0 0
  %803 = vmatpush1.bf16.msra.mxu0 %v151
  %804 = vmatprep.subr.bf16.mxu0 0
  %805 = vmatpush1.bf16.msra.mxu0 %v152
  %806 = vmatprep.subr.bf16.mxu0 0
  %807 = vmatpush1.bf16.msra.mxu0 0
  %808 = vmatprep.subr.bf16.mxu0 0
  %809 = vmatpush1.bf16.msra.mxu0 0
  %810 = vmatprep.subr.bf16.mxu0 0
  %811 = vmatpush1.bf16.msra.mxu0 0
  %812 = vmatprep.subr.bf16.mxu0 0
  %813 = vmatpush1.bf16.msra.mxu0 0
  %814 = vmatprep.subr.bf16.mxu0 0
  %815 = vmatpush1.bf16.msra.mxu0 0
  %816 = vmatprep.subr.bf16.mxu0 0
  %817 = vmatpush1.bf16.msra.mxu0 0
  %818 = vmatprep.subr.bf16.mxu0 0
  %819 = vmatpush1.bf16.msra.mxu0 0
  %820 = vmatprep.subr.bf16.mxu0 0
  %821 = vmatpush1.bf16.msra.mxu0 0
  %822 = vmatprep.subr.bf16.mxu0 0
  %823 = vmatpush1.bf16.msra.mxu0 0
  %824 = vmatprep.subr.bf16.mxu0 0
  %825 = vmatpush1.bf16.msra.mxu0 0
  %826 = vmatprep.subr.bf16.mxu0 0
  %827 = vmatpush1.bf16.msra.mxu0 0
  %828 = vmatprep.subr.bf16.mxu0 0
  %829 = vmatpush1.bf16.msra.mxu0 0
  %830 = vmatprep.subr.bf16.mxu0 0
  %831 = vmatpush1.bf16.msra.mxu0 0
  %832 = vmatprep.subr.bf16.mxu0 0
  %833 = vmatpush1.bf16.msra.mxu0 0
  %834 = vmatprep.mubr.bf16.mxu0 0
  %835 = vmatmul.mubr.bf16.gmra.mrb[0].mxu0 %v759
  %v836 = vpop.f32.mrb[0].mxu0
  %v837 = vadd.f32 0.0, %v836
  %v838 = vpop.f32.mrb[0].mxu0
  %v839 = vpop.f32.mrb[0].mxu0
  %v840 = vpop.f32.mrb[0].mxu0
  %841 = vdwg.mxu0
  %v842 = vadd.f32 %v132, %v837
  %v843 = vxor.u32 %v842, 2147483648
  %v844 = vmul.f32 %v843, 1.442695
  %v845 = vpow.pop %v844
  %v846 = vadd.f32 %v845, 1.0
  %v847 = vrcp.pop %v846
  %v848 = vmul.f32 1.0, %v847
  %v849 = vtanh.pop %v842
  %v850 = vmul.f32 %v848, %v731
  %852 = vrot.lane.b32.xlu0 %v849, 64
  %v853 = vpop.permute.xlu0 %852
  %v855 = vmul.f32 %v848, %v853
  %857 = vrot.lane.b32.xlu0 %v855, 32
  %v858 = vpop.permute.xlu0 %857
  %v860 = vadd.f32 %v850, %v858
  %v861 = vtanh.pop %v860
  %863 = vrot.lane.b32.xlu0 %v861, 64
  %v864 = vpop.permute.xlu0 %863
  %v866 = vmul.f32 %v848, %v864
  %v867 = vpack.c.bf16 %v866, %v866
  %v868 = vld [vmem:[%s3 + $0x50] sm:$0xf]
  %v869 = vld [vmem:[%s3 + $0x54] sm:$0xf]
  %v870 = vld [vmem:[%s3 + $0x58] sm:$0xf]
  %v871 = vld [vmem:[%s3 + $0x5c] sm:$0xf]
  %873 = vrot.lane.b32.xlu0 %v867, 32
  %v874 = vpop.permute.xlu0 %873
  %v879 = vunpack.c.l.b16 %v868
  %v880 = vunpack.c.l.b16 %v869
  %v881 = vunpack.c.l.b16 %v870
  %v882 = vunpack.c.l.b16 %v871
  %v883 = vpack.c.b16 %v880, %v879
  %v884 = vpack.c.b16 %v882, %v881
  %v888 = vsel %vm155, %v874, 0
  %890 = vmatprep.subr.bf16.mxu0 0
  %891 = vmatpush1.bf16.msra.mxu0 %v883
  %892 = vmatprep.subr.bf16.mxu0 0
  %893 = vmatpush1.bf16.msra.mxu0 %v884
  %894 = vmatprep.subr.bf16.mxu0 0
  %895 = vmatpush1.bf16.msra.mxu0 0
  %896 = vmatprep.subr.bf16.mxu0 0
  %897 = vmatpush1.bf16.msra.mxu0 0
  %898 = vmatprep.subr.bf16.mxu0 0
  %899 = vmatpush1.bf16.msra.mxu0 0
  %900 = vmatprep.subr.bf16.mxu0 0
  %901 = vmatpush1.bf16.msra.mxu0 0
  %902 = vmatprep.subr.bf16.mxu0 0
  %903 = vmatpush1.bf16.msra.mxu0 0
  %904 = vmatprep.subr.bf16.mxu0 0
  %905 = vmatpush1.bf16.msra.mxu0 0
  %906 = vmatprep.subr.bf16.mxu0 0
  %907 = vmatpush1.bf16.msra.mxu0 0
  %908 = vmatprep.subr.bf16.mxu0 0
  %909 = vmatpush1.bf16.msra.mxu0 0
  %910 = vmatprep.subr.bf16.mxu0 0
  %911 = vmatpush1.bf16.msra.mxu0 0
  %912 = vmatprep.subr.bf16.mxu0 0
  %913 = vmatpush1.bf16.msra.mxu0 0
  %914 = vmatprep.subr.bf16.mxu0 0
  %915 = vmatpush1.bf16.msra.mxu0 0
  %916 = vmatprep.subr.bf16.mxu0 0
  %917 = vmatpush1.bf16.msra.mxu0 0
  %918 = vmatprep.subr.bf16.mxu0 0
  %919 = vmatpush1.bf16.msra.mxu0 0
  %920 = vmatprep.subr.bf16.mxu0 0
  %921 = vmatpush1.bf16.msra.mxu0 0
  %922 = vmatprep.mubr.bf16.mxu0 0
  %923 = vmatmul.mubr.bf16.gmra.mrb[0].mxu0 %v888
  %v924 = vpop.f32.mrb[0].mxu0
  %v925 = vadd.f32 0.0, %v924
  %v926 = vpop.f32.mrb[0].mxu0
  %v927 = vpop.f32.mrb[0].mxu0
  %v928 = vpop.f32.mrb[0].mxu0
  %929 = vdwg.mxu0
  %v930 = vadd.f32 %v801, %v925
  %931 = vmatprep.subr.bf16.mxu0 0
  %932 = vmatpush1.bf16.msra.mxu0 %v151
  %933 = vmatprep.subr.bf16.mxu0 0
  %934 = vmatpush1.bf16.msra.mxu0 %v152
  %935 = vmatprep.subr.bf16.mxu0 0
  %936 = vmatpush1.bf16.msra.mxu0 0
  %937 = vmatprep.subr.bf16.mxu0 0
  %938 = vmatpush1.bf16.msra.mxu0 0
  %939 = vmatprep.subr.bf16.mxu0 0
  %940 = vmatpush1.bf16.msra.mxu0 0
  %941 = vmatprep.subr.bf16.mxu0 0
  %942 = vmatpush1.bf16.msra.mxu0 0
  %943 = vmatprep.subr.bf16.mxu0 0
  %944 = vmatpush1.bf16.msra.mxu0 0
  %945 = vmatprep.subr.bf16.mxu0 0
  %946 = vmatpush1.bf16.msra.mxu0 0
  %947 = vmatprep.subr.bf16.mxu0 0
  %948 = vmatpush1.bf16.msra.mxu0 0
  %949 = vmatprep.subr.bf16.mxu0 0
  %950 = vmatpush1.bf16.msra.mxu0 0
  %951 = vmatprep.subr.bf16.mxu0 0
  %952 = vmatpush1.bf16.msra.mxu0 0
  %953 = vmatprep.subr.bf16.mxu0 0
  %954 = vmatpush1.bf16.msra.mxu0 0
  %955 = vmatprep.subr.bf16.mxu0 0
  %956 = vmatpush1.bf16.msra.mxu0 0
  %957 = vmatprep.subr.bf16.mxu0 0
  %958 = vmatpush1.bf16.msra.mxu0 0
  %959 = vmatprep.subr.bf16.mxu0 0
  %960 = vmatpush1.bf16.msra.mxu0 0
  %961 = vmatprep.subr.bf16.mxu0 0
  %962 = vmatpush1.bf16.msra.mxu0 0
  %963 = vmatprep.mubr.bf16.mxu0 0
  %964 = vmatmul.mubr.bf16.gmra.mrb[0].mxu0 %v888
  %v965 = vpop.f32.mrb[0].mxu0
  %v966 = vadd.f32 0.0, %v965
  %v967 = vpop.f32.mrb[0].mxu0
  %v968 = vpop.f32.mrb[0].mxu0
  %v969 = vpop.f32.mrb[0].mxu0
  %970 = vdwg.mxu0
  %v971 = vadd.f32 %v137, %v966
  %v972 = vxor.u32 %v971, 2147483648
  %v973 = vmul.f32 %v972, 1.442695
  %v974 = vpow.pop %v973
  %v975 = vadd.f32 %v974, 1.0
  %v976 = vrcp.pop %v975
  %v977 = vmul.f32 1.0, %v976
  %v978 = vtanh.pop %v971
  %v979 = vmul.f32 %v977, %v860
  %981 = vrot.lane.b32.xlu0 %v978, 64
  %v982 = vpop.permute.xlu0 %981
  %v984 = vmul.f32 %v977, %v982
  %986 = vrot.lane.b32.xlu0 %v984, 32
  %v987 = vpop.permute.xlu0 %986
  %v989 = vadd.f32 %v979, %v987
  %v990 = vtanh.pop %v989
  %992 = vrot.lane.b32.xlu0 %v990, 64
  %v993 = vpop.permute.xlu0 %992
  %v995 = vmul.f32 %v977, %v993
  %v996 = vpack.c.bf16 %v995, %v995
  %v997 = vld [vmem:[%s3 + $0x60] sm:$0xf]
  %v998 = vld [vmem:[%s3 + $0x64] sm:$0xf]
  %v999 = vld [vmem:[%s3 + $0x68] sm:$0xf]
  %v1000 = vld [vmem:[%s3 + $0x6c] sm:$0xf]
  %1002 = vrot.lane.b32.xlu0 %v996, 32
  %v1003 = vpop.permute.xlu0 %1002
  %v1008 = vunpack.c.l.b16 %v997
  %v1009 = vunpack.c.l.b16 %v998
  %v1010 = vunpack.c.l.b16 %v999
  %v1011 = vunpack.c.l.b16 %v1000
  %v1012 = vpack.c.b16 %v1009, %v1008
  %v1013 = vpack.c.b16 %v1011, %v1010
  %v1017 = vsel %vm155, %v1003, 0
  %1019 = vmatprep.subr.bf16.mxu0 0
  %1020 = vmatpush1.bf16.msra.mxu0 %v1012
  %1021 = vmatprep.subr.bf16.mxu0 0
  %1022 = vmatpush1.bf16.msra.mxu0 %v1013
  %1023 = vmatprep.subr.bf16.mxu0 0
  %1024 = vmatpush1.bf16.msra.mxu0 0
  %1025 = vmatprep.subr.bf16.mxu0 0
  %1026 = vmatpush1.bf16.msra.mxu0 0
  %1027 = vmatprep.subr.bf16.mxu0 0
  %1028 = vmatpush1.bf16.msra.mxu0 0
  %1029 = vmatprep.subr.bf16.mxu0 0
  %1030 = vmatpush1.bf16.msra.mxu0 0
  %1031 = vmatprep.subr.bf16.mxu0 0
  %1032 = vmatpush1.bf16.msra.mxu0 0
  %1033 = vmatprep.subr.bf16.mxu0 0
  %1034 = vmatpush1.bf16.msra.mxu0 0
  %1035 = vmatprep.subr.bf16.mxu0 0
  %1036 = vmatpush1.bf16.msra.mxu0 0
  %1037 = vmatprep.subr.bf16.mxu0 0
  %1038 = vmatpush1.bf16.msra.mxu0 0
  %1039 = vmatprep.subr.bf16.mxu0 0
  %1040 = vmatpush1.bf16.msra.mxu0 0
  %1041 = vmatprep.subr.bf16.mxu0 0
  %1042 = vmatpush1.bf16.msra.mxu0 0
  %1043 = vmatprep.subr.bf16.mxu0 0
  %1044 = vmatpush1.bf16.msra.mxu0 0
  %1045 = vmatprep.subr.bf16.mxu0 0
  %1046 = vmatpush1.bf16.msra.mxu0 0
  %1047 = vmatprep.subr.bf16.mxu0 0
  %1048 = vmatpush1.bf16.msra.mxu0 0
  %1049 = vmatprep.subr.bf16.mxu0 0
  %1050 = vmatpush1.bf16.msra.mxu0 0
  %1051 = vmatprep.mubr.bf16.mxu0 0
  %1052 = vmatmul.mubr.bf16.gmra.mrb[0].mxu0 %v1017
  %v1053 = vpop.f32.mrb[0].mxu0
  %v1054 = vadd.f32 0.0, %v1053
  %v1055 = vpop.f32.mrb[0].mxu0
  %v1056 = vpop.f32.mrb[0].mxu0
  %v1057 = vpop.f32.mrb[0].mxu0
  %1058 = vdwg.mxu0
  %v1059 = vadd.f32 %v930, %v1054
  %1060 = vmatprep.subr.bf16.mxu0 0
  %1061 = vmatpush1.bf16.msra.mxu0 %v151
  %1062 = vmatprep.subr.bf16.mxu0 0
  %1063 = vmatpush1.bf16.msra.mxu0 %v152
  %1064 = vmatprep.subr.bf16.mxu0 0
  %1065 = vmatpush1.bf16.msra.mxu0 0
  %1066 = vmatprep.subr.bf16.mxu0 0
  %1067 = vmatpush1.bf16.msra.mxu0 0
  %1068 = vmatprep.subr.bf16.mxu0 0
  %1069 = vmatpush1.bf16.msra.mxu0 0
  %1070 = vmatprep.subr.bf16.mxu0 0
  %1071 = vmatpush1.bf16.msra.mxu0 0
  %1072 = vmatprep.subr.bf16.mxu0 0
  %1073 = vmatpush1.bf16.msra.mxu0 0
  %1074 = vmatprep.subr.bf16.mxu0 0
  %1075 = vmatpush1.bf16.msra.mxu0 0
  %1076 = vmatprep.subr.bf16.mxu0 0
  %1077 = vmatpush1.bf16.msra.mxu0 0
  %1078 = vmatprep.subr.bf16.mxu0 0
  %1079 = vmatpush1.bf16.msra.mxu0 0
  %1080 = vmatprep.subr.bf16.mxu0 0
  %1081 = vmatpush1.bf16.msra.mxu0 0
  %1082 = vmatprep.subr.bf16.mxu0 0
  %1083 = vmatpush1.bf16.msra.mxu0 0
  %1084 = vmatprep.subr.bf16.mxu0 0
  %1085 = vmatpush1.bf16.msra.mxu0 0
  %1086 = vmatprep.subr.bf16.mxu0 0
  %1087 = vmatpush1.bf16.msra.mxu0 0
  %1088 = vmatprep.subr.bf16.mxu0 0
  %1089 = vmatpush1.bf16.msra.mxu0 0
  %1090 = vmatprep.subr.bf16.mxu0 0
  %1091 = vmatpush1.bf16.msra.mxu0 0
  %1092 = vmatprep.mubr.bf16.mxu0 0
  %1093 = vmatmul.mubr.bf16.gmra.mrb[0].mxu0 %v1017
  %v1094 = vpop.f32.mrb[0].mxu0
  %v1095 = vadd.f32 0.0, %v1094
  %v1096 = vpop.f32.mrb[0].mxu0
  %v1097 = vpop.f32.mrb[0].mxu0
  %v1098 = vpop.f32.mrb[0].mxu0
  %1099 = vdwg.mxu0
  %v1100 = vadd.f32 %v140, %v1095
  %v1101 = vxor.u32 %v1100, 2147483648
  %v1102 = vmul.f32 %v1101, 1.442695
  %v1103 = vpow.pop %v1102
  %v1104 = vadd.f32 %v1103, 1.0
  %v1105 = vrcp.pop %v1104
  %v1106 = vmul.f32 1.0, %v1105
  %v1107 = vtanh.pop %v1100
  %v1108 = vmul.f32 %v1106, %v989
  %1110 = vrot.lane.b32.xlu0 %v1107, 64
  %v1111 = vpop.permute.xlu0 %1110
  %v1113 = vmul.f32 %v1106, %v1111
  %1115 = vrot.lane.b32.xlu0 %v1113, 32
  %v1116 = vpop.permute.xlu0 %1115
  %v1118 = vadd.f32 %v1108, %v1116
  %v1119 = vtanh.pop %v1118
  %1121 = vrot.lane.b32.xlu0 %v1119, 64
  %v1122 = vpop.permute.xlu0 %1121
  %v1124 = vmul.f32 %v1106, %v1122
  %v1125 = vpack.c.bf16 %v1124, %v1124
  %v1126 = vld [vmem:[%s3 + $0x70] sm:$0xf]
  %v1127 = vld [vmem:[%s3 + $0x74] sm:$0xf]
  %v1128 = vld [vmem:[%s3 + $0x78] sm:$0xf]
  %v1129 = vld [vmem:[%s3 + $0x7c] sm:$0xf]
  %1131 = vrot.lane.b32.xlu0 %v1125, 32
  %v1132 = vpop.permute.xlu0 %1131
  %v1137 = vunpack.c.l.b16 %v1126
  %v1138 = vunpack.c.l.b16 %v1127
  %v1139 = vunpack.c.l.b16 %v1128
  %v1140 = vunpack.c.l.b16 %v1129
  %v1141 = vpack.c.b16 %v1138, %v1137
  %v1142 = vpack.c.b16 %v1140, %v1139
  %v1146 = vsel %vm155, %v1132, 0
  %1148 = vmatprep.subr.bf16.mxu0 0
  %1149 = vmatpush1.bf16.msra.mxu0 %v1141
  %1150 = vmatprep.subr.bf16.mxu0 0
  %1151 = vmatpush1.bf16.msra.mxu0 %v1142
  %1152 = vmatprep.subr.bf16.mxu0 0
  %1153 = vmatpush1.bf16.msra.mxu0 0
  %1154 = vmatprep.subr.bf16.mxu0 0
  %1155 = vmatpush1.bf16.msra.mxu0 0
  %1156 = vmatprep.subr.bf16.mxu0 0
  %1157 = vmatpush1.bf16.msra.mxu0 0
  %1158 = vmatprep.subr.bf16.mxu0 0
  %1159 = vmatpush1.bf16.msra.mxu0 0
  %1160 = vmatprep.subr.bf16.mxu0 0
  %1161 = vmatpush1.bf16.msra.mxu0 0
  %1162 = vmatprep.subr.bf16.mxu0 0
  %1163 = vmatpush1.bf16.msra.mxu0 0
  %1164 = vmatprep.subr.bf16.mxu0 0
  %1165 = vmatpush1.bf16.msra.mxu0 0
  %1166 = vmatprep.subr.bf16.mxu0 0
  %1167 = vmatpush1.bf16.msra.mxu0 0
  %1168 = vmatprep.subr.bf16.mxu0 0
  %1169 = vmatpush1.bf16.msra.mxu0 0
  %1170 = vmatprep.subr.bf16.mxu0 0
  %1171 = vmatpush1.bf16.msra.mxu0 0
  %1172 = vmatprep.subr.bf16.mxu0 0
  %1173 = vmatpush1.bf16.msra.mxu0 0
  %1174 = vmatprep.subr.bf16.mxu0 0
  %1175 = vmatpush1.bf16.msra.mxu0 0
  %1176 = vmatprep.subr.bf16.mxu0 0
  %1177 = vmatpush1.bf16.msra.mxu0 0
  %1178 = vmatprep.subr.bf16.mxu0 0
  %1179 = vmatpush1.bf16.msra.mxu0 0
  %1180 = vmatprep.mubr.bf16.mxu0 0
  %1181 = vmatmul.mubr.bf16.gmra.mrb[0].mxu0 %v1146
  %v1182 = vpop.f32.mrb[0].mxu0
  %v1183 = vadd.f32 0.0, %v1182
  %v1184 = vpop.f32.mrb[0].mxu0
  %v1185 = vpop.f32.mrb[0].mxu0
  %v1186 = vpop.f32.mrb[0].mxu0
  %1187 = vdwg.mxu0
  %v1188 = vadd.f32 %v1059, %v1183
  %v1189 = vld [vmem:[%s4 + $0x1] sm:$0x1]
  %v1191 = vlaneseq
  %v1192 = vshrl.u32 %v1191, 7
  %v1193 = vsub.s32 0, %v1192
  %v1194 = vrot.slane %v1189, %v1193
  %v1196 = vadd.f32 %v1188, %v1194
  %v1197 = vmax.f32 %v1196, 0.0
  %v1198 = vpack.c.bf16 %v1197, %v1197
  %v1199 = vld [vmem:[%s3 + $0x80] sm:$0xf]
  %v1200 = vld [vmem:[%s3 + $0x84] sm:$0xf]
  %v1201 = vld [vmem:[%s3 + $0x88] sm:$0xf]
  %v1202 = vld [vmem:[%s3 + $0x8c] sm:$0xf]
  %v1207 = vunpack.c.l.b16 %v1199
  %v1208 = vunpack.c.l.b16 %v1200
  %v1209 = vunpack.c.l.b16 %v1201
  %v1210 = vunpack.c.l.b16 %v1202
  %v1211 = vpack.c.b16 %v1208, %v1207
  %v1212 = vpack.c.b16 %v1210, %v1209
  %1215 = vrot.lane.b32.xlu0 %v1194, 96
  %v1216 = vpop.permute.xlu0 %1215
  %v1219 = vsel %vm155, %v1198, 0
  %1221 = vmatprep.subr.bf16.mxu0 0
  %1222 = vmatpush1.bf16.msra.mxu0 %v1211
  %1223 = vmatprep.subr.bf16.mxu0 0
  %1224 = vmatpush1.bf16.msra.mxu0 %v1212
  %1225 = vmatprep.subr.bf16.mxu0 0
  %1226 = vmatpush1.bf16.msra.mxu0 0
  %1227 = vmatprep.subr.bf16.mxu0 0
  %1228 = vmatpush1.bf16.msra.mxu0 0
  %1229 = vmatprep.subr.bf16.mxu0 0
  %1230 = vmatpush1.bf16.msra.mxu0 0
  %1231 = vmatprep.subr.bf16.mxu0 0
  %1232 = vmatpush1.bf16.msra.mxu0 0
  %1233 = vmatprep.subr.bf16.mxu0 0
  %1234 = vmatpush1.bf16.msra.mxu0 0
  %1235 = vmatprep.subr.bf16.mxu0 0
  %1236 = vmatpush1.bf16.msra.mxu0 0
  %1237 = vmatprep.subr.bf16.mxu0 0
  %1238 = vmatpush1.bf16.msra.mxu0 0
  %1239 = vmatprep.subr.bf16.mxu0 0
  %1240 = vmatpush1.bf16.msra.mxu0 0
  %1241 = vmatprep.subr.bf16.mxu0 0
  %1242 = vmatpush1.bf16.msra.mxu0 0
  %1243 = vmatprep.subr.bf16.mxu0 0
  %1244 = vmatpush1.bf16.msra.mxu0 0
  %1245 = vmatprep.subr.bf16.mxu0 0
  %1246 = vmatpush1.bf16.msra.mxu0 0
  %1247 = vmatprep.subr.bf16.mxu0 0
  %1248 = vmatpush1.bf16.msra.mxu0 0
  %1249 = vmatprep.subr.bf16.mxu0 0
  %1250 = vmatpush1.bf16.msra.mxu0 0
  %1251 = vmatprep.subr.bf16.mxu0 0
  %1252 = vmatpush1.bf16.msra.mxu0 0
  %1253 = vmatprep.mubr.bf16.mxu0 0
  %1254 = vmatmul.mubr.bf16.gmra.mrb[0].mxu0 %v1219
  %v1255 = vpop.f32.mrb[0].mxu0
  %v1256 = vadd.f32 %v1216, %v1255
  %v1257 = vpop.f32.mrb[0].mxu0
  %v1258 = vpop.f32.mrb[0].mxu0
  %v1259 = vpop.f32.mrb[0].mxu0
  %1260 = vdwg.mxu0
  %v1261 = vmax.f32 %v1256, 0.0
  %v1262 = vpack.c.bf16 %v1261, %v1261
  %v1263 = vld [vmem:[%s3 + $0x90] sm:$0xf]
  %v1264 = vld [vmem:[%s3 + $0x94] sm:$0xf]
  %v1265 = vld [vmem:[%s3 + $0x98] sm:$0xf]
  %v1266 = vld [vmem:[%s3 + $0x9c] sm:$0xf]
  %v1271 = vunpack.c.l.b16 %v1263
  %v1272 = vunpack.c.l.b16 %v1264
  %v1273 = vunpack.c.l.b16 %v1265
  %v1274 = vunpack.c.l.b16 %v1266
  %v1275 = vpack.c.b16 %v1272, %v1271
  %v1276 = vpack.c.b16 %v1274, %v1273
  %1279 = vrot.lane.b32.xlu0 %v1194, 64
  %v1280 = vpop.permute.xlu0 %1279
  %v1283 = vsel %vm155, %v1262, 0
  %1285 = vmatprep.subr.bf16.mxu0 0
  %1286 = vmatpush1.bf16.msra.mxu0 %v1275
  %1287 = vmatprep.subr.bf16.mxu0 0
  %1288 = vmatpush1.bf16.msra.mxu0 %v1276
  %1289 = vmatprep.subr.bf16.mxu0 0
  %1290 = vmatpush1.bf16.msra.mxu0 0
  %1291 = vmatprep.subr.bf16.mxu0 0
  %1292 = vmatpush1.bf16.msra.mxu0 0
  %1293 = vmatprep.subr.bf16.mxu0 0
  %1294 = vmatpush1.bf16.msra.mxu0 0
  %1295 = vmatprep.subr.bf16.mxu0 0
  %1296 = vmatpush1.bf16.msra.mxu0 0
  %1297 = vmatprep.subr.bf16.mxu0 0
  %1298 = vmatpush1.bf16.msra.mxu0 0
  %1299 = vmatprep.subr.bf16.mxu0 0
  %1300 = vmatpush1.bf16.msra.mxu0 0
  %1301 = vmatprep.subr.bf16.mxu0 0
  %1302 = vmatpush1.bf16.msra.mxu0 0
  %1303 = vmatprep.subr.bf16.mxu0 0
  %1304 = vmatpush1.bf16.msra.mxu0 0
  %1305 = vmatprep.subr.bf16.mxu0 0
  %1306 = vmatpush1.bf16.msra.mxu0 0
  %1307 = vmatprep.subr.bf16.mxu0 0
  %1308 = vmatpush1.bf16.msra.mxu0 0
  %1309 = vmatprep.subr.bf16.mxu0 0
  %1310 = vmatpush1.bf16.msra.mxu0 0
  %1311 = vmatprep.subr.bf16.mxu0 0
  %1312 = vmatpush1.bf16.msra.mxu0 0
  %1313 = vmatprep.subr.bf16.mxu0 0
  %1314 = vmatpush1.bf16.msra.mxu0 0
  %1315 = vmatprep.subr.bf16.mxu0 0
  %1316 = vmatpush1.bf16.msra.mxu0 0
  %1317 = vmatprep.mubr.bf16.mxu0 0
  %1318 = vmatmul.mubr.bf16.gmra.mrb[0].mxu0 %v1283
  %v1319 = vpop.f32.mrb[0].mxu0
  %v1320 = vadd.f32 %v1280, %v1319
  %v1321 = vpop.f32.mrb[0].mxu0
  %v1322 = vpop.f32.mrb[0].mxu0
  %v1323 = vpop.f32.mrb[0].mxu0
  %1324 = vdwg.mxu0
  %v1325 = vmax.f32 %v1320, 0.0
  %v1326 = vpack.c.bf16 %v1325, %v1325
  %v1327 = vld [vmem:[%s3 + $0xa0] sm:$0xf]
  %v1328 = vld [vmem:[%s3 + $0xa4] sm:$0xf]
  %v1329 = vld [vmem:[%s3 + $0xa8] sm:$0xf]
  %v1330 = vld [vmem:[%s3 + $0xac] sm:$0xf]
  %v1335 = vunpack.c.l.b16 %v1327
  %v1336 = vunpack.c.l.b16 %v1328
  %v1337 = vunpack.c.l.b16 %v1329
  %v1338 = vunpack.c.l.b16 %v1330
  %v1339 = vpack.c.b16 %v1336, %v1335
  %v1340 = vpack.c.b16 %v1338, %v1337
  %1343 = vrot.lane.b32.xlu0 %v1194, 32
  %v1344 = vpop.permute.xlu0 %1343
  %v1347 = vsel %vm155, %v1326, 0
  %1349 = vmatprep.subr.bf16.mxu0 0
  %1350 = vmatpush1.bf16.msra.mxu0 %v1339
  %1351 = vmatprep.subr.bf16.mxu0 0
  %1352 = vmatpush1.bf16.msra.mxu0 %v1340
  %1353 = vmatprep.subr.bf16.mxu0 0
  %1354 = vmatpush1.bf16.msra.mxu0 0
  %1355 = vmatprep.subr.bf16.mxu0 0
  %1356 = vmatpush1.bf16.msra.mxu0 0
  %1357 = vmatprep.subr.bf16.mxu0 0
  %1358 = vmatpush1.bf16.msra.mxu0 0
  %1359 = vmatprep.subr.bf16.mxu0 0
  %1360 = vmatpush1.bf16.msra.mxu0 0
  %1361 = vmatprep.subr.bf16.mxu0 0
  %1362 = vmatpush1.bf16.msra.mxu0 0
  %1363 = vmatprep.subr.bf16.mxu0 0
  %1364 = vmatpush1.bf16.msra.mxu0 0
  %1365 = vmatprep.subr.bf16.mxu0 0
  %1366 = vmatpush1.bf16.msra.mxu0 0
  %1367 = vmatprep.subr.bf16.mxu0 0
  %1368 = vmatpush1.bf16.msra.mxu0 0
  %1369 = vmatprep.subr.bf16.mxu0 0
  %1370 = vmatpush1.bf16.msra.mxu0 0
  %1371 = vmatprep.subr.bf16.mxu0 0
  %1372 = vmatpush1.bf16.msra.mxu0 0
  %1373 = vmatprep.subr.bf16.mxu0 0
  %1374 = vmatpush1.bf16.msra.mxu0 0
  %1375 = vmatprep.subr.bf16.mxu0 0
  %1376 = vmatpush1.bf16.msra.mxu0 0
  %1377 = vmatprep.subr.bf16.mxu0 0
  %1378 = vmatpush1.bf16.msra.mxu0 0
  %1379 = vmatprep.subr.bf16.mxu0 0
  %1380 = vmatpush1.bf16.msra.mxu0 0
  %1381 = vmatprep.mubr.bf16.mxu0 0
  %1382 = vmatmul.mubr.bf16.gmra.mrb[0].mxu0 %v1347
  %v1383 = vpop.f32.mrb[0].mxu0
  %v1384 = vadd.f32 %v1344, %v1383
  %v1385 = vpop.f32.mrb[0].mxu0
  %v1386 = vpop.f32.mrb[0].mxu0
  %v1387 = vpop.f32.mrb[0].mxu0
  %1388 = vdwg.mxu0
  %v1389 = vmax.f32 %v1384, 0.0
  %v1390 = vpack.c.bf16 %v1389, %v1389
  %v1391 = vld [vmem:[%s3 + $0xb0] sm:$0xf]
  %v1392 = vld [vmem:[%s3 + $0xb4] sm:$0xf]
  %v1393 = vld [vmem:[%s3 + $0xb8] sm:$0xf]
  %v1394 = vld [vmem:[%s3 + $0xbc] sm:$0xf]
  %v1399 = vunpack.c.l.b16 %v1391
  %v1400 = vunpack.c.l.b16 %v1392
  %v1401 = vunpack.c.l.b16 %v1393
  %v1402 = vunpack.c.l.b16 %v1394
  %v1403 = vpack.c.b16 %v1400, %v1399
  %v1404 = vpack.c.b16 %v1402, %v1401
  %v1408 = vsel %vm155, %v1390, 0
  %1410 = vmatprep.subr.bf16.mxu0 0
  %1411 = vmatpush1.bf16.msra.mxu0 %v1403
  %1412 = vmatprep.subr.bf16.mxu0 0
  %1413 = vmatpush1.bf16.msra.mxu0 %v1404
  %1414 = vmatprep.subr.bf16.mxu0 0
  %1415 = vmatpush1.bf16.msra.mxu0 0
  %1416 = vmatprep.subr.bf16.mxu0 0
  %1417 = vmatpush1.bf16.msra.mxu0 0
  %1418 = vmatprep.subr.bf16.mxu0 0
  %1419 = vmatpush1.bf16.msra.mxu0 0
  %1420 = vmatprep.subr.bf16.mxu0 0
  %1421 = vmatpush1.bf16.msra.mxu0 0
  %1422 = vmatprep.subr.bf16.mxu0 0
  %1423 = vmatpush1.bf16.msra.mxu0 0
  %1424 = vmatprep.subr.bf16.mxu0 0
  %1425 = vmatpush1.bf16.msra.mxu0 0
  %1426 = vmatprep.subr.bf16.mxu0 0
  %1427 = vmatpush1.bf16.msra.mxu0 0
  %1428 = vmatprep.subr.bf16.mxu0 0
  %1429 = vmatpush1.bf16.msra.mxu0 0
  %1430 = vmatprep.subr.bf16.mxu0 0
  %1431 = vmatpush1.bf16.msra.mxu0 0
  %1432 = vmatprep.subr.bf16.mxu0 0
  %1433 = vmatpush1.bf16.msra.mxu0 0
  %1434 = vmatprep.subr.bf16.mxu0 0
  %1435 = vmatpush1.bf16.msra.mxu0 0
  %1436 = vmatprep.subr.bf16.mxu0 0
  %1437 = vmatpush1.bf16.msra.mxu0 0
  %1438 = vmatprep.subr.bf16.mxu0 0
  %1439 = vmatpush1.bf16.msra.mxu0 0
  %1440 = vmatprep.subr.bf16.mxu0 0
  %1441 = vmatpush1.bf16.msra.mxu0 0
  %1442 = vmatprep.mubr.bf16.mxu0 0
  %1443 = vmatmul.mubr.bf16.gmra.mrb[0].mxu0 %v1408
  %v1444 = vpop.f32.mrb[0].mxu0
  %v1445 = vadd.f32 0.0, %v1444
  %v1446 = vpop.f32.mrb[0].mxu0
  %v1447 = vpop.f32.mrb[0].mxu0
  %v1448 = vpop.f32.mrb[0].mxu0
  %1449 = vdwg.mxu0
  %v1450 = vld [vmem:[%s4 + $0x2] sm:$0x1]
  %v1452 = vlaneseq
  %v1453 = vshrl.u32 %v1452, 7
  %v1454 = vsub.s32 0, %v1453
  %v1455 = vrot.slane %v1450, %v1454
  %v1457 = vadd.f32 %v1445, %v1455
  %vm1458 = vcmask 7168
  %1459 = vst.msk [vmem:[%s5] sm:$0xff] %vm1458, %v1457
  // Predicated region
  $region22: #{lstm_forecaster_forward.1} parent=0 // pred_check
    _
  $region23: #{lstm_forecaster_forward.1} parent=0 // pred_check_branch
    %1461 = sbr.rel (0) target = $region25
  $region24: #{lstm_forecaster_forward.1} parent=0 // pred_region
    _
  $region25: #{lstm_forecaster_forward.1} parent=0 // pred_fallthru
    _
  // Predicated region
  $region26: #{lstm_forecaster_forward.1} parent=0 // pred_check
    _
  $region27: #{lstm_forecaster_forward.1} parent=0 // pred_check_branch
    %1463 = sbr.rel (0) target = $region29
  $region28: #{lstm_forecaster_forward.1} parent=0 // pred_region
    _
  $region29: #{lstm_forecaster_forward.1} parent=0 // pred_fallthru
    _

</llo_original>
